<compile_context>
chip_gen: v7x
topology: tpu7x:2x2x1
jax: 0.10.0
libtpu: 0.0.40
codegen_flags: <defaults>
</compile_context>

<pallas_src>
from functools import partial

import jax
import jax.numpy as jnp
from jax.experimental import pallas as pl
from jax.experimental.pallas import tpu as pltpu

LN_EPS = 1e-5  # PyTorch nn.LayerNorm default


# ----------------------------------------------------------------------------
# Fused kernel: LN + (q_vis, q_inf, k_diff, v_diff) projections + attention
# ----------------------------------------------------------------------------
def fused_diff_kernel(scale, num_heads, head_dim,
                      xv_ref, xi_ref, lng_ref, lnb_ref,
                      wq_ref, wk_ref, wv_ref,
                      w1t_ref, b1_ref, w2t_ref, b2_ref,
                      ov_ref, oi_ref):
    xv = xv_ref[0]                       # (N, C) f32
    xi = xi_ref[0]
    xd = xv - xi                         # fused difference (stays in VMEM)

    gamma = lng_ref[...]                 # (1, C)
    beta = lnb_ref[...]

    def layernorm(x):
        m = jnp.mean(x, axis=-1, keepdims=True)
        v = jnp.mean((x - m) ** 2, axis=-1, keepdims=True)
        return (x - m) * jax.lax.rsqrt(v + LN_EPS) * gamma + beta

    # bf16 MXU operands, f32 accumulation.
    xvn = layernorm(xv).astype(jnp.bfloat16)
    xin = layernorm(xi).astype(jnp.bfloat16)
    xdn = layernorm(xd).astype(jnp.bfloat16)

    wq = wq_ref[...]                     # (C, C) bf16 (pre-cast in wrapper)
    q_vis = jnp.dot(xvn, wq, preferred_element_type=jnp.float32)     # (N, C)
    q_inf = jnp.dot(xin, wq, preferred_element_type=jnp.float32)     # (N, C)
    k_diff = jnp.dot(xdn, wk_ref[...], preferred_element_type=jnp.float32)
    v_diff = jnp.dot(xdn, wv_ref[...], preferred_element_type=jnp.float32)

    n_tok = q_vis.shape[0]
    # Concatenate the two query sets on the row axis: one score/PV matmul pair
    # per head shared between the vis / inf branches.  Pre-scale q (N*hd mul)
    # instead of scaling the (2N, N) score matrix.
    q_cat = (jnp.concatenate([q_vis, q_inf], axis=0) * scale).astype(jnp.bfloat16)
    k_b = k_diff.astype(jnp.bfloat16)
    v_b = v_diff.astype(jnp.bfloat16)
    w1t = w1t_ref[...]                   # (hd, hd) bf16, pre-transposed
    w2t = w2t_ref[...]

    outs_vis = []
    outs_inf = []
    for h in range(num_heads):           # static unroll — no per-step grid cost
        sl = slice(h * head_dim, (h + 1) * head_dim)
        # scores: (2N, hd) x (N, hd)^T -> (2N, N), contracted on the last dims.
        s = jax.lax.dot_general(
            q_cat[:, sl], k_b[:, sl],
            (((1,), (1,)), ((), ())),
            preferred_element_type=jnp.float32)
        s = s - jnp.max(s, axis=-1, keepdims=True)            # stable softmax
        p = jnp.exp(s)
        p = p * pl.reciprocal(jnp.sum(p, axis=-1, keepdims=True), approx=True)
        # attn_drop(p=0.0) is the identity — omitted.
        o = jnp.dot(p.astype(jnp.bfloat16), v_b[:, sl],
                    preferred_element_type=jnp.float32)        # (2N, hd)
        o_b = o.astype(jnp.bfloat16)
        outs_vis.append(jnp.dot(o_b[:n_tok], w1t, preferred_element_type=jnp.float32))
        outs_inf.append(jnp.dot(o_b[n_tok:], w2t, preferred_element_type=jnp.float32))

    # Lane-dense (N, C) outputs: heads merged onto the channel axis, bias tiled
    # per head (broadcast once), residual q added in the same layout.
    ov_ref[0] = jnp.concatenate(outs_vis, axis=-1) + b1_ref[...] + q_vis
    oi_ref[0] = jnp.concatenate(outs_inf, axis=-1) + b2_ref[...] + q_inf


# ----------------------------------------------------------------------------
# Fun1 forward (Pallas-backed)
# ----------------------------------------------------------------------------
def fun1_forward(params, x_vis, x_inf, *, num_heads):
    B, N, C = x_vis.shape
    hd = C // num_heads
    scale = hd ** (-0.5)

    # Only the weight slices that feed used outputs (q for vis/inf, k/v for
    # diff); cast to bf16 once (also halves the weight DMA bytes).
    w_q = params["w_qkv_t"][:, :C].astype(jnp.bfloat16)               # (C, C)
    w_k_diff = params["w_qkv_diff_t"][:, C:2 * C].astype(jnp.bfloat16)
    w_v_diff = params["w_qkv_diff_t"][:, 2 * C:].astype(jnp.bfloat16)
    w1_t = params["w_proj1"].T.astype(jnp.bfloat16)                   # (hd, hd)
    w2_t = params["w_proj2"].T.astype(jnp.bfloat16)
    b1_full = jnp.tile(params["b_proj1"], (1, num_heads))             # (1, C)
    b2_full = jnp.tile(params["b_proj2"], (1, num_heads))

    x_spec = pl.BlockSpec((1, N, C), lambda b: (b, 0, 0))
    vec_spec = pl.BlockSpec((1, C), lambda b: (0, 0))
    w_spec = pl.BlockSpec((C, C), lambda b: (0, 0))
    wp_spec = pl.BlockSpec((hd, hd), lambda b: (0, 0))
    out_shape = jax.ShapeDtypeStruct((B, N, C), jnp.float32)

    kernel = partial(fused_diff_kernel, scale, num_heads, hd)
    return pl.pallas_call(
        kernel,
        out_shape=(out_shape, out_shape),
        grid_spec=pltpu.PrefetchScalarGridSpec(
            num_scalar_prefetch=0,
            grid=(B,),
            in_specs=[x_spec, x_spec, vec_spec, vec_spec,
                      w_spec, w_spec, w_spec,
                      wp_spec, vec_spec, wp_spec, vec_spec],
            out_specs=[x_spec, x_spec],
        ),
        compiler_params=pltpu.CompilerParams(
            dimension_semantics=("parallel",)),  # batch sharded across TCs on v7x
    )(x_vis, x_inf, params["ln_g"], params["ln_b"],
      w_q, w_k_diff, w_v_diff, w1_t, b1_full, w2_t, b2_full)


# ----------------------------------------------------------------------------
# Pure-JAX reference (mirrors the PyTorch forward exactly) for validation
# ----------------------------------------------------------------------------
def fun1_reference(params, x_vis, x_inf, *, num_heads):
    B, N, C = x_vis.shape
    hd = C // num_heads
    scale = hd ** (-0.5)

    def ln(x):
        m = jnp.mean(x, axis=-1, keepdims=True)
        v = jnp.mean((x - m) ** 2, axis=-1, keepdims=True)
        return (x - m) / jnp.sqrt(v + LN_EPS) * params["ln_g"][0] + params["ln_b"][0]

    def qkv(x, w_t):
        y = ln(x) @ w_t                                      # (B, N, 3C)
        return y.reshape(B, N, 3, num_heads, hd).transpose(2, 0, 3, 1, 4)

    q_vis = qkv(x_vis, params["w_qkv_t"])[0]
    q_inf = qkv(x_inf, params["w_qkv_t"])[0]
    _, k_diff, v_diff = qkv(x_vis - x_inf, params["w_qkv_diff_t"])

    def attend(q, w, b):
        s = jnp.einsum("bhnd,bhmd->bhnm", q, k_diff) * scale
        p = jax.nn.softmax(s, axis=-1)
        o = jnp.einsum("bhnm,bhmd->bhnd", p, v_diff)
        o = o @ w.T + b[0]
        return o + q

    ov = attend(q_vis, params["w_proj1"], params["b_proj1"])
    oi = attend(q_inf, params["w_proj2"], params["b_proj2"])
    return (ov.transpose(0, 2, 1, 3).reshape(B, N, C),
            oi.transpose(0, 2, 1, 3).reshape(B, N, C))


# ----------------------------------------------------------------------------
# Deterministic parameter init + demo
# ----------------------------------------------------------------------------
def make_params(key, dim, num_heads):
    hd = dim // num_heads
    ks = jax.random.split(key, 6)
    s = 0.02
    return {
        # LayerNorm default init: gamma=1, beta=0
        "ln_g": jnp.ones((1, dim), jnp.float32),
        "ln_b": jnp.zeros((1, dim), jnp.float32),
        # qkv / qkv_diff linear weights, stored transposed as (C, 3C), no bias
        "w_qkv_t": s * jax.random.normal(ks[0], (dim, 3 * dim), jnp.float32),
        "w_qkv_diff_t": s * jax.random.normal(ks[1], (dim, 3 * dim), jnp.float32),
        # dif_proj1 / dif_proj2 (hd -> hd) with bias
        "w_proj1": s * jax.random.normal(ks[2], (hd, hd), jnp.float32),
        "b_proj1": s * jax.random.normal(ks[3], (1, hd), jnp.float32),
        "w_proj2": s * jax.random.normal(ks[4], (hd, hd), jnp.float32),
        "b_proj2": s * jax.random.normal(ks[5], (1, hd), jnp.float32),
    }


if __name__ == "__main__":
    B, N, DIM, HEADS = 2, 16, 64, 4   # small shapes consistent with the module

    key = jax.random.PRNGKey(0)
    kp, kx1, kx2 = jax.random.split(key, 3)
    params = make_params(kp, DIM, HEADS)
    x_vis = jax.random.normal(kx1, (B, N, DIM), jnp.float32)
    x_inf = jax.random.normal(kx2, (B, N, DIM), jnp.float32)

    forward = jax.jit(partial(fun1_forward, num_heads=HEADS))  # num_heads static
    out_vis, out_inf = forward(params, x_vis, x_inf)
    jax.block_until_ready((out_vis, out_inf))

    ref_vis, ref_inf = fun1_reference(params, x_vis, x_inf, num_heads=HEADS)
    assert out_vis.shape == (B, N, DIM) and out_inf.shape == (B, N, DIM)
    # Tolerance loosened vs f32-only version because MXU operands are bf16
    # (f32 accumulation) per the v6e/v7x performance guidance.
    assert jnp.allclose(out_vis, ref_vis, rtol=2e-2, atol=2e-2), \
        float(jnp.max(jnp.abs(out_vis - ref_vis)))
    assert jnp.allclose(out_inf, ref_inf, rtol=2e-2, atol=2e-2), \
        float(jnp.max(jnp.abs(out_inf - ref_inf)))

    print("KERNEL_OK")
</pallas_src>

<mosaic_0001>
module attributes {stable_mosaic.version = 11 : i64} {
  func.func @fused_diff_kernel(%arg0: i32, %arg1: memref<1x16x64xf32, #tpu.memory_space<vmem>>, %arg2: memref<1x16x64xf32, #tpu.memory_space<vmem>>, %arg3: memref<1x64xf32, #tpu.memory_space<vmem>>, %arg4: memref<1x64xf32, #tpu.memory_space<vmem>>, %arg5: memref<64x64xbf16, #tpu.memory_space<vmem>>, %arg6: memref<64x64xbf16, #tpu.memory_space<vmem>>, %arg7: memref<64x64xbf16, #tpu.memory_space<vmem>>, %arg8: memref<16x16xbf16, #tpu.memory_space<vmem>>, %arg9: memref<1x64xf32, #tpu.memory_space<vmem>>, %arg10: memref<16x16xbf16, #tpu.memory_space<vmem>>, %arg11: memref<1x64xf32, #tpu.memory_space<vmem>>, %arg12: memref<1x16x64xf32, #tpu.memory_space<vmem>>, %arg13: memref<1x16x64xf32, #tpu.memory_space<vmem>>) attributes {dimension_semantics = [#tpu.dimension_semantics<parallel>], iteration_bounds = array<i64: 2>, scalar_prefetch = 0 : i64, scratch_operands = 0 : i64, tpu.core_type = #tpu.core_type<tc>, window_params = [{transform_indices = @transform_0, window_bounds = array<i64: 1, 16, 64>}, {transform_indices = @transform_1, window_bounds = array<i64: 1, 16, 64>}, {pipeline_mode = #tpu.pipeline_mode<synchronous>, transform_indices = @transform_2, window_bounds = array<i64: 1, 64>}, {pipeline_mode = #tpu.pipeline_mode<synchronous>, transform_indices = @transform_3, window_bounds = array<i64: 1, 64>}, {pipeline_mode = #tpu.pipeline_mode<synchronous>, transform_indices = @transform_4, window_bounds = array<i64: 64, 64>}, {pipeline_mode = #tpu.pipeline_mode<synchronous>, transform_indices = @transform_5, window_bounds = array<i64: 64, 64>}, {pipeline_mode = #tpu.pipeline_mode<synchronous>, transform_indices = @transform_6, window_bounds = array<i64: 64, 64>}, {pipeline_mode = #tpu.pipeline_mode<synchronous>, transform_indices = @transform_7, window_bounds = array<i64: 16, 16>}, {pipeline_mode = #tpu.pipeline_mode<synchronous>, transform_indices = @transform_8, window_bounds = array<i64: 1, 64>}, {pipeline_mode = #tpu.pipeline_mode<synchronous>, transform_indices = @transform_9, window_bounds = array<i64: 16, 16>}, {pipeline_mode = #tpu.pipeline_mode<synchronous>, transform_indices = @transform_10, window_bounds = array<i64: 1, 64>}, {transform_indices = @transform_11, window_bounds = array<i64: 1, 16, 64>}, {transform_indices = @transform_12, window_bounds = array<i64: 1, 16, 64>}]} {
    %c0 = arith.constant 0 : index
    %c0_0 = arith.constant 0 : index
    %c0_1 = arith.constant 0 : index
    %0 = vector.load %arg1[%c0, %c0_0, %c0_1] : memref<1x16x64xf32, #tpu.memory_space<vmem>>, vector<1x16x64xf32>
    %1 = vector.shape_cast %0 : vector<1x16x64xf32> to vector<16x64xf32>
    %c0_2 = arith.constant 0 : index
    %c0_3 = arith.constant 0 : index
    %c0_4 = arith.constant 0 : index
    %2 = vector.load %arg2[%c0_2, %c0_3, %c0_4] : memref<1x16x64xf32, #tpu.memory_space<vmem>>, vector<1x16x64xf32>
    %3 = vector.shape_cast %2 : vector<1x16x64xf32> to vector<16x64xf32>
    %4 = arith.subf %1, %3 : vector<16x64xf32>
    %c0_5 = arith.constant 0 : index
    %c0_6 = arith.constant 0 : index
    %5 = vector.load %arg3[%c0_5, %c0_6] : memref<1x64xf32, #tpu.memory_space<vmem>>, vector<1x64xf32>
    %c0_7 = arith.constant 0 : index
    %c0_8 = arith.constant 0 : index
    %6 = vector.load %arg4[%c0_7, %c0_8] : memref<1x64xf32, #tpu.memory_space<vmem>>, vector<1x64xf32>
    %cst = arith.constant dense<0.000000e+00> : vector<16xf32>
    %7 = vector.multi_reduction <add>, %1, %cst [1] : vector<16x64xf32> to vector<16xf32>
    %8 = vector.shape_cast %7 : vector<16xf32> to vector<16x1xf32>
    %cst_9 = arith.constant 6.400000e+01 : f32
    %9 = vector.broadcast %cst_9 : f32 to vector<16x1xf32>
    %10 = arith.divf %8, %9 : vector<16x1xf32>
    %11 = vector.broadcast %10 : vector<16x1xf32> to vector<16x64xf32>
    %12 = arith.subf %1, %11 : vector<16x64xf32>
    %13 = arith.mulf %12, %12 : vector<16x64xf32>
    %cst_10 = arith.constant dense<0.000000e+00> : vector<16xf32>
    %14 = vector.multi_reduction <add>, %13, %cst_10 [1] : vector<16x64xf32> to vector<16xf32>
    %15 = vector.shape_cast %14 : vector<16xf32> to vector<16x1xf32>
    %cst_11 = arith.constant 6.400000e+01 : f32
    %16 = vector.broadcast %cst_11 : f32 to vector<16x1xf32>
    %17 = arith.divf %15, %16 : vector<16x1xf32>
    %18 = vector.broadcast %10 : vector<16x1xf32> to vector<16x64xf32>
    %19 = arith.subf %1, %18 : vector<16x64xf32>
    %cst_12 = arith.constant 9.99999974E-6 : f32
    %20 = vector.broadcast %cst_12 : f32 to vector<16x1xf32>
    %21 = arith.addf %17, %20 : vector<16x1xf32>
    %22 = math.rsqrt %21 : vector<16x1xf32>
    %23 = vector.broadcast %22 : vector<16x1xf32> to vector<16x64xf32>
    %24 = arith.mulf %19, %23 : vector<16x64xf32>
    %25 = vector.broadcast %5 : vector<1x64xf32> to vector<16x64xf32>
    %26 = arith.mulf %24, %25 : vector<16x64xf32>
    %27 = vector.broadcast %6 : vector<1x64xf32> to vector<16x64xf32>
    %28 = arith.addf %26, %27 : vector<16x64xf32>
    %29 = arith.truncf %28 : vector<16x64xf32> to vector<16x64xbf16>
    %cst_13 = arith.constant dense<0.000000e+00> : vector<16xf32>
    %30 = vector.multi_reduction <add>, %3, %cst_13 [1] : vector<16x64xf32> to vector<16xf32>
    %31 = vector.shape_cast %30 : vector<16xf32> to vector<16x1xf32>
    %cst_14 = arith.constant 6.400000e+01 : f32
    %32 = vector.broadcast %cst_14 : f32 to vector<16x1xf32>
    %33 = arith.divf %31, %32 : vector<16x1xf32>
    %34 = vector.broadcast %33 : vector<16x1xf32> to vector<16x64xf32>
    %35 = arith.subf %3, %34 : vector<16x64xf32>
    %36 = arith.mulf %35, %35 : vector<16x64xf32>
    %cst_15 = arith.constant dense<0.000000e+00> : vector<16xf32>
    %37 = vector.multi_reduction <add>, %36, %cst_15 [1] : vector<16x64xf32> to vector<16xf32>
    %38 = vector.shape_cast %37 : vector<16xf32> to vector<16x1xf32>
    %cst_16 = arith.constant 6.400000e+01 : f32
    %39 = vector.broadcast %cst_16 : f32 to vector<16x1xf32>
    %40 = arith.divf %38, %39 : vector<16x1xf32>
    %41 = vector.broadcast %33 : vector<16x1xf32> to vector<16x64xf32>
    %42 = arith.subf %3, %41 : vector<16x64xf32>
    %cst_17 = arith.constant 9.99999974E-6 : f32
    %43 = vector.broadcast %cst_17 : f32 to vector<16x1xf32>
    %44 = arith.addf %40, %43 : vector<16x1xf32>
    %45 = math.rsqrt %44 : vector<16x1xf32>
    %46 = vector.broadcast %45 : vector<16x1xf32> to vector<16x64xf32>
    %47 = arith.mulf %42, %46 : vector<16x64xf32>
    %48 = vector.broadcast %5 : vector<1x64xf32> to vector<16x64xf32>
    %49 = arith.mulf %47, %48 : vector<16x64xf32>
    %50 = vector.broadcast %6 : vector<1x64xf32> to vector<16x64xf32>
    %51 = arith.addf %49, %50 : vector<16x64xf32>
    %52 = arith.truncf %51 : vector<16x64xf32> to vector<16x64xbf16>
    %cst_18 = arith.constant dense<0.000000e+00> : vector<16xf32>
    %53 = vector.multi_reduction <add>, %4, %cst_18 [1] : vector<16x64xf32> to vector<16xf32>
    %54 = vector.shape_cast %53 : vector<16xf32> to vector<16x1xf32>
    %cst_19 = arith.constant 6.400000e+01 : f32
    %55 = vector.broadcast %cst_19 : f32 to vector<16x1xf32>
    %56 = arith.divf %54, %55 : vector<16x1xf32>
    %57 = vector.broadcast %56 : vector<16x1xf32> to vector<16x64xf32>
    %58 = arith.subf %4, %57 : vector<16x64xf32>
    %59 = arith.mulf %58, %58 : vector<16x64xf32>
    %cst_20 = arith.constant dense<0.000000e+00> : vector<16xf32>
    %60 = vector.multi_reduction <add>, %59, %cst_20 [1] : vector<16x64xf32> to vector<16xf32>
    %61 = vector.shape_cast %60 : vector<16xf32> to vector<16x1xf32>
    %cst_21 = arith.constant 6.400000e+01 : f32
    %62 = vector.broadcast %cst_21 : f32 to vector<16x1xf32>
    %63 = arith.divf %61, %62 : vector<16x1xf32>
    %64 = vector.broadcast %56 : vector<16x1xf32> to vector<16x64xf32>
    %65 = arith.subf %4, %64 : vector<16x64xf32>
    %cst_22 = arith.constant 9.99999974E-6 : f32
    %66 = vector.broadcast %cst_22 : f32 to vector<16x1xf32>
    %67 = arith.addf %63, %66 : vector<16x1xf32>
    %68 = math.rsqrt %67 : vector<16x1xf32>
    %69 = vector.broadcast %68 : vector<16x1xf32> to vector<16x64xf32>
    %70 = arith.mulf %65, %69 : vector<16x64xf32>
    %71 = vector.broadcast %5 : vector<1x64xf32> to vector<16x64xf32>
    %72 = arith.mulf %70, %71 : vector<16x64xf32>
    %73 = vector.broadcast %6 : vector<1x64xf32> to vector<16x64xf32>
    %74 = arith.addf %72, %73 : vector<16x64xf32>
    %75 = arith.truncf %74 : vector<16x64xf32> to vector<16x64xbf16>
    %c0_23 = arith.constant 0 : index
    %c0_24 = arith.constant 0 : index
    %76 = vector.load %arg5[%c0_23, %c0_24] : memref<64x64xbf16, #tpu.memory_space<vmem>>, vector<64x64xbf16>
    %cst_25 = arith.constant dense<0.000000e+00> : vector<16x64xf32>
    %77 = tpu.matmul %29, %76, %cst_25 {dimension_numbers = #tpu.dot_dimension_numbers<[1], [0], [0], [1], [0, 0, 1, 1], [], []>} : vector<16x64xbf16>, vector<64x64xbf16>, vector<16x64xf32> -> vector<16x64xf32>
    %cst_26 = arith.constant dense<0.000000e+00> : vector<16x64xf32>
    %78 = tpu.matmul %52, %76, %cst_26 {dimension_numbers = #tpu.dot_dimension_numbers<[1], [0], [0], [1], [0, 0, 1, 1], [], []>} : vector<16x64xbf16>, vector<64x64xbf16>, vector<16x64xf32> -> vector<16x64xf32>
    %c0_27 = arith.constant 0 : index
    %c0_28 = arith.constant 0 : index
    %79 = vector.load %arg6[%c0_27, %c0_28] : memref<64x64xbf16, #tpu.memory_space<vmem>>, vector<64x64xbf16>
    %cst_29 = arith.constant dense<0.000000e+00> : vector<16x64xf32>
    %80 = tpu.matmul %75, %79, %cst_29 {dimension_numbers = #tpu.dot_dimension_numbers<[1], [0], [0], [1], [0, 0, 1, 1], [], []>} : vector<16x64xbf16>, vector<64x64xbf16>, vector<16x64xf32> -> vector<16x64xf32>
    %c0_30 = arith.constant 0 : index
    %c0_31 = arith.constant 0 : index
    %81 = vector.load %arg7[%c0_30, %c0_31] : memref<64x64xbf16, #tpu.memory_space<vmem>>, vector<64x64xbf16>
    %cst_32 = arith.constant dense<0.000000e+00> : vector<16x64xf32>
    %82 = tpu.matmul %75, %81, %cst_32 {dimension_numbers = #tpu.dot_dimension_numbers<[1], [0], [0], [1], [0, 0, 1, 1], [], []>} : vector<16x64xbf16>, vector<64x64xbf16>, vector<16x64xf32> -> vector<16x64xf32>
    %83 = tpu.concatenate %77, %78 in 0 : vector<16x64xf32>, vector<16x64xf32> -> vector<32x64xf32>
    %cst_33 = arith.constant 2.500000e-01 : f32
    %84 = vector.broadcast %cst_33 : f32 to vector<32x64xf32>
    %85 = arith.mulf %83, %84 : vector<32x64xf32>
    %86 = arith.truncf %85 : vector<32x64xf32> to vector<32x64xbf16>
    %87 = arith.truncf %80 : vector<16x64xf32> to vector<16x64xbf16>
    %88 = arith.truncf %82 : vector<16x64xf32> to vector<16x64xbf16>
    %c0_34 = arith.constant 0 : index
    %c0_35 = arith.constant 0 : index
    %89 = vector.load %arg8[%c0_34, %c0_35] : memref<16x16xbf16, #tpu.memory_space<vmem>>, vector<16x16xbf16>
    %c0_36 = arith.constant 0 : index
    %c0_37 = arith.constant 0 : index
    %90 = vector.load %arg10[%c0_36, %c0_37] : memref<16x16xbf16, #tpu.memory_space<vmem>>, vector<16x16xbf16>
    %91 = vector.extract_strided_slice %86 {offsets = [0, 0], sizes = [32, 16], strides = [1, 1]} : vector<32x64xbf16> to vector<32x16xbf16>
    %92 = vector.extract_strided_slice %87 {offsets = [0, 0], sizes = [16, 16], strides = [1, 1]} : vector<16x64xbf16> to vector<16x16xbf16>
    %cst_38 = arith.constant dense<0.000000e+00> : vector<32x16xf32>
    %93 = tpu.matmul %91, %92, %cst_38 {dimension_numbers = #tpu.dot_dimension_numbers<[1], [1], [0], [0], [0, 0, 1, 0], [], []>} : vector<32x16xbf16>, vector<16x16xbf16>, vector<32x16xf32> -> vector<32x16xf32>
    %cst_39 = arith.constant dense<0xFF800000> : vector<32xf32>
    %94 = vector.multi_reduction <maximumf>, %93, %cst_39 [1] : vector<32x16xf32> to vector<32xf32>
    %95 = vector.shape_cast %94 : vector<32xf32> to vector<32x1xf32>
    %96 = vector.broadcast %95 : vector<32x1xf32> to vector<32x16xf32>
    %97 = arith.subf %93, %96 : vector<32x16xf32>
    %98 = math.exp %97 : vector<32x16xf32>
    %cst_40 = arith.constant dense<0.000000e+00> : vector<32xf32>
    %99 = vector.multi_reduction <add>, %98, %cst_40 [1] : vector<32x16xf32> to vector<32xf32>
    %100 = vector.shape_cast %99 : vector<32xf32> to vector<32x1xf32>
    %101 = tpu.reciprocal %100 {approx = true} : vector<32x1xf32> -> vector<32x1xf32>
    %102 = vector.broadcast %101 : vector<32x1xf32> to vector<32x16xf32>
    %103 = arith.mulf %98, %102 : vector<32x16xf32>
    %104 = arith.truncf %103 : vector<32x16xf32> to vector<32x16xbf16>
    %105 = vector.extract_strided_slice %88 {offsets = [0, 0], sizes = [16, 16], strides = [1, 1]} : vector<16x64xbf16> to vector<16x16xbf16>
    %cst_41 = arith.constant dense<0.000000e+00> : vector<32x16xf32>
    %106 = tpu.matmul %104, %105, %cst_41 {dimension_numbers = #tpu.dot_dimension_numbers<[1], [0], [0], [1], [0, 0, 1, 1], [], []>} : vector<32x16xbf16>, vector<16x16xbf16>, vector<32x16xf32> -> vector<32x16xf32>
    %107 = arith.truncf %106 : vector<32x16xf32> to vector<32x16xbf16>
    %108 = vector.extract_strided_slice %107 {offsets = [0, 0], sizes = [16, 16], strides = [1, 1]} : vector<32x16xbf16> to vector<16x16xbf16>
    %cst_42 = arith.constant dense<0.000000e+00> : vector<16x16xf32>
    %109 = tpu.matmul %108, %89, %cst_42 {dimension_numbers = #tpu.dot_dimension_numbers<[1], [0], [0], [1], [0, 0, 1, 1], [], []>} : vector<16x16xbf16>, vector<16x16xbf16>, vector<16x16xf32> -> vector<16x16xf32>
    %110 = vector.extract_strided_slice %107 {offsets = [16, 0], sizes = [16, 16], strides = [1, 1]} : vector<32x16xbf16> to vector<16x16xbf16>
    %cst_43 = arith.constant dense<0.000000e+00> : vector<16x16xf32>
    %111 = tpu.matmul %110, %90, %cst_43 {dimension_numbers = #tpu.dot_dimension_numbers<[1], [0], [0], [1], [0, 0, 1, 1], [], []>} : vector<16x16xbf16>, vector<16x16xbf16>, vector<16x16xf32> -> vector<16x16xf32>
    %112 = vector.extract_strided_slice %86 {offsets = [0, 16], sizes = [32, 16], strides = [1, 1]} : vector<32x64xbf16> to vector<32x16xbf16>
    %113 = vector.extract_strided_slice %87 {offsets = [0, 16], sizes = [16, 16], strides = [1, 1]} : vector<16x64xbf16> to vector<16x16xbf16>
    %cst_44 = arith.constant dense<0.000000e+00> : vector<32x16xf32>
    %114 = tpu.matmul %112, %113, %cst_44 {dimension_numbers = #tpu.dot_dimension_numbers<[1], [1], [0], [0], [0, 0, 1, 0], [], []>} : vector<32x16xbf16>, vector<16x16xbf16>, vector<32x16xf32> -> vector<32x16xf32>
    %cst_45 = arith.constant dense<0xFF800000> : vector<32xf32>
    %115 = vector.multi_reduction <maximumf>, %114, %cst_45 [1] : vector<32x16xf32> to vector<32xf32>
    %116 = vector.shape_cast %115 : vector<32xf32> to vector<32x1xf32>
    %117 = vector.broadcast %116 : vector<32x1xf32> to vector<32x16xf32>
    %118 = arith.subf %114, %117 : vector<32x16xf32>
    %119 = math.exp %118 : vector<32x16xf32>
    %cst_46 = arith.constant dense<0.000000e+00> : vector<32xf32>
    %120 = vector.multi_reduction <add>, %119, %cst_46 [1] : vector<32x16xf32> to vector<32xf32>
    %121 = vector.shape_cast %120 : vector<32xf32> to vector<32x1xf32>
    %122 = tpu.reciprocal %121 {approx = true} : vector<32x1xf32> -> vector<32x1xf32>
    %123 = vector.broadcast %122 : vector<32x1xf32> to vector<32x16xf32>
    %124 = arith.mulf %119, %123 : vector<32x16xf32>
    %125 = arith.truncf %124 : vector<32x16xf32> to vector<32x16xbf16>
    %126 = vector.extract_strided_slice %88 {offsets = [0, 16], sizes = [16, 16], strides = [1, 1]} : vector<16x64xbf16> to vector<16x16xbf16>
    %cst_47 = arith.constant dense<0.000000e+00> : vector<32x16xf32>
    %127 = tpu.matmul %125, %126, %cst_47 {dimension_numbers = #tpu.dot_dimension_numbers<[1], [0], [0], [1], [0, 0, 1, 1], [], []>} : vector<32x16xbf16>, vector<16x16xbf16>, vector<32x16xf32> -> vector<32x16xf32>
    %128 = arith.truncf %127 : vector<32x16xf32> to vector<32x16xbf16>
    %129 = vector.extract_strided_slice %128 {offsets = [0, 0], sizes = [16, 16], strides = [1, 1]} : vector<32x16xbf16> to vector<16x16xbf16>
    %cst_48 = arith.constant dense<0.000000e+00> : vector<16x16xf32>
    %130 = tpu.matmul %129, %89, %cst_48 {dimension_numbers = #tpu.dot_dimension_numbers<[1], [0], [0], [1], [0, 0, 1, 1], [], []>} : vector<16x16xbf16>, vector<16x16xbf16>, vector<16x16xf32> -> vector<16x16xf32>
    %131 = vector.extract_strided_slice %128 {offsets = [16, 0], sizes = [16, 16], strides = [1, 1]} : vector<32x16xbf16> to vector<16x16xbf16>
    %cst_49 = arith.constant dense<0.000000e+00> : vector<16x16xf32>
    %132 = tpu.matmul %131, %90, %cst_49 {dimension_numbers = #tpu.dot_dimension_numbers<[1], [0], [0], [1], [0, 0, 1, 1], [], []>} : vector<16x16xbf16>, vector<16x16xbf16>, vector<16x16xf32> -> vector<16x16xf32>
    %133 = vector.extract_strided_slice %86 {offsets = [0, 32], sizes = [32, 16], strides = [1, 1]} : vector<32x64xbf16> to vector<32x16xbf16>
    %134 = vector.extract_strided_slice %87 {offsets = [0, 32], sizes = [16, 16], strides = [1, 1]} : vector<16x64xbf16> to vector<16x16xbf16>
    %cst_50 = arith.constant dense<0.000000e+00> : vector<32x16xf32>
    %135 = tpu.matmul %133, %134, %cst_50 {dimension_numbers = #tpu.dot_dimension_numbers<[1], [1], [0], [0], [0, 0, 1, 0], [], []>} : vector<32x16xbf16>, vector<16x16xbf16>, vector<32x16xf32> -> vector<32x16xf32>
    %cst_51 = arith.constant dense<0xFF800000> : vector<32xf32>
    %136 = vector.multi_reduction <maximumf>, %135, %cst_51 [1] : vector<32x16xf32> to vector<32xf32>
    %137 = vector.shape_cast %136 : vector<32xf32> to vector<32x1xf32>
    %138 = vector.broadcast %137 : vector<32x1xf32> to vector<32x16xf32>
    %139 = arith.subf %135, %138 : vector<32x16xf32>
    %140 = math.exp %139 : vector<32x16xf32>
    %cst_52 = arith.constant dense<0.000000e+00> : vector<32xf32>
    %141 = vector.multi_reduction <add>, %140, %cst_52 [1] : vector<32x16xf32> to vector<32xf32>
    %142 = vector.shape_cast %141 : vector<32xf32> to vector<32x1xf32>
    %143 = tpu.reciprocal %142 {approx = true} : vector<32x1xf32> -> vector<32x1xf32>
    %144 = vector.broadcast %143 : vector<32x1xf32> to vector<32x16xf32>
    %145 = arith.mulf %140, %144 : vector<32x16xf32>
    %146 = arith.truncf %145 : vector<32x16xf32> to vector<32x16xbf16>
    %147 = vector.extract_strided_slice %88 {offsets = [0, 32], sizes = [16, 16], strides = [1, 1]} : vector<16x64xbf16> to vector<16x16xbf16>
    %cst_53 = arith.constant dense<0.000000e+00> : vector<32x16xf32>
    %148 = tpu.matmul %146, %147, %cst_53 {dimension_numbers = #tpu.dot_dimension_numbers<[1], [0], [0], [1], [0, 0, 1, 1], [], []>} : vector<32x16xbf16>, vector<16x16xbf16>, vector<32x16xf32> -> vector<32x16xf32>
    %149 = arith.truncf %148 : vector<32x16xf32> to vector<32x16xbf16>
    %150 = vector.extract_strided_slice %149 {offsets = [0, 0], sizes = [16, 16], strides = [1, 1]} : vector<32x16xbf16> to vector<16x16xbf16>
    %cst_54 = arith.constant dense<0.000000e+00> : vector<16x16xf32>
    %151 = tpu.matmul %150, %89, %cst_54 {dimension_numbers = #tpu.dot_dimension_numbers<[1], [0], [0], [1], [0, 0, 1, 1], [], []>} : vector<16x16xbf16>, vector<16x16xbf16>, vector<16x16xf32> -> vector<16x16xf32>
    %152 = vector.extract_strided_slice %149 {offsets = [16, 0], sizes = [16, 16], strides = [1, 1]} : vector<32x16xbf16> to vector<16x16xbf16>
    %cst_55 = arith.constant dense<0.000000e+00> : vector<16x16xf32>
    %153 = tpu.matmul %152, %90, %cst_55 {dimension_numbers = #tpu.dot_dimension_numbers<[1], [0], [0], [1], [0, 0, 1, 1], [], []>} : vector<16x16xbf16>, vector<16x16xbf16>, vector<16x16xf32> -> vector<16x16xf32>
    %154 = vector.extract_strided_slice %86 {offsets = [0, 48], sizes = [32, 16], strides = [1, 1]} : vector<32x64xbf16> to vector<32x16xbf16>
    %155 = vector.extract_strided_slice %87 {offsets = [0, 48], sizes = [16, 16], strides = [1, 1]} : vector<16x64xbf16> to vector<16x16xbf16>
    %cst_56 = arith.constant dense<0.000000e+00> : vector<32x16xf32>
    %156 = tpu.matmul %154, %155, %cst_56 {dimension_numbers = #tpu.dot_dimension_numbers<[1], [1], [0], [0], [0, 0, 1, 0], [], []>} : vector<32x16xbf16>, vector<16x16xbf16>, vector<32x16xf32> -> vector<32x16xf32>
    %cst_57 = arith.constant dense<0xFF800000> : vector<32xf32>
    %157 = vector.multi_reduction <maximumf>, %156, %cst_57 [1] : vector<32x16xf32> to vector<32xf32>
    %158 = vector.shape_cast %157 : vector<32xf32> to vector<32x1xf32>
    %159 = vector.broadcast %158 : vector<32x1xf32> to vector<32x16xf32>
    %160 = arith.subf %156, %159 : vector<32x16xf32>
    %161 = math.exp %160 : vector<32x16xf32>
    %cst_58 = arith.constant dense<0.000000e+00> : vector<32xf32>
    %162 = vector.multi_reduction <add>, %161, %cst_58 [1] : vector<32x16xf32> to vector<32xf32>
    %163 = vector.shape_cast %162 : vector<32xf32> to vector<32x1xf32>
    %164 = tpu.reciprocal %163 {approx = true} : vector<32x1xf32> -> vector<32x1xf32>
    %165 = vector.broadcast %164 : vector<32x1xf32> to vector<32x16xf32>
    %166 = arith.mulf %161, %165 : vector<32x16xf32>
    %167 = arith.truncf %166 : vector<32x16xf32> to vector<32x16xbf16>
    %168 = vector.extract_strided_slice %88 {offsets = [0, 48], sizes = [16, 16], strides = [1, 1]} : vector<16x64xbf16> to vector<16x16xbf16>
    %cst_59 = arith.constant dense<0.000000e+00> : vector<32x16xf32>
    %169 = tpu.matmul %167, %168, %cst_59 {dimension_numbers = #tpu.dot_dimension_numbers<[1], [0], [0], [1], [0, 0, 1, 1], [], []>} : vector<32x16xbf16>, vector<16x16xbf16>, vector<32x16xf32> -> vector<32x16xf32>
    %170 = arith.truncf %169 : vector<32x16xf32> to vector<32x16xbf16>
    %171 = vector.extract_strided_slice %170 {offsets = [0, 0], sizes = [16, 16], strides = [1, 1]} : vector<32x16xbf16> to vector<16x16xbf16>
    %cst_60 = arith.constant dense<0.000000e+00> : vector<16x16xf32>
    %172 = tpu.matmul %171, %89, %cst_60 {dimension_numbers = #tpu.dot_dimension_numbers<[1], [0], [0], [1], [0, 0, 1, 1], [], []>} : vector<16x16xbf16>, vector<16x16xbf16>, vector<16x16xf32> -> vector<16x16xf32>
    %173 = vector.extract_strided_slice %170 {offsets = [16, 0], sizes = [16, 16], strides = [1, 1]} : vector<32x16xbf16> to vector<16x16xbf16>
    %cst_61 = arith.constant dense<0.000000e+00> : vector<16x16xf32>
    %174 = tpu.matmul %173, %90, %cst_61 {dimension_numbers = #tpu.dot_dimension_numbers<[1], [0], [0], [1], [0, 0, 1, 1], [], []>} : vector<16x16xbf16>, vector<16x16xbf16>, vector<16x16xf32> -> vector<16x16xf32>
    %175 = tpu.concatenate %109, %130, %151, %172 in 1 : vector<16x16xf32>, vector<16x16xf32>, vector<16x16xf32>, vector<16x16xf32> -> vector<16x64xf32>
    %c0_62 = arith.constant 0 : index
    %c0_63 = arith.constant 0 : index
    %176 = vector.load %arg9[%c0_62, %c0_63] : memref<1x64xf32, #tpu.memory_space<vmem>>, vector<1x64xf32>
    %177 = vector.broadcast %176 : vector<1x64xf32> to vector<16x64xf32>
    %178 = arith.addf %175, %177 : vector<16x64xf32>
    %179 = arith.addf %178, %77 : vector<16x64xf32>
    %c0_64 = arith.constant 0 : index
    %c0_65 = arith.constant 0 : index
    %c0_66 = arith.constant 0 : index
    %180 = vector.load %arg12[%c0_64, %c0_65, %c0_66] : memref<1x16x64xf32, #tpu.memory_space<vmem>>, vector<1x16x64xf32>
    %181 = vector.shape_cast %180 : vector<1x16x64xf32> to vector<16x64xf32>
    %182 = vector.shape_cast %179 : vector<16x64xf32> to vector<1x16x64xf32>
    tpu.vector_store %arg12[%c0_64, %c0_65, %c0_66], %182 {strides = array<i32>} : memref<1x16x64xf32, #tpu.memory_space<vmem>>, vector<1x16x64xf32>,
    %183 = tpu.concatenate %111, %132, %153, %174 in 1 : vector<16x16xf32>, vector<16x16xf32>, vector<16x16xf32>, vector<16x16xf32> -> vector<16x64xf32>
    %c0_67 = arith.constant 0 : index
    %c0_68 = arith.constant 0 : index
    %184 = vector.load %arg11[%c0_67, %c0_68] : memref<1x64xf32, #tpu.memory_space<vmem>>, vector<1x64xf32>
    %185 = vector.broadcast %184 : vector<1x64xf32> to vector<16x64xf32>
    %186 = arith.addf %183, %185 : vector<16x64xf32>
    %187 = arith.addf %186, %78 : vector<16x64xf32>
    %c0_69 = arith.constant 0 : index
    %c0_70 = arith.constant 0 : index
    %c0_71 = arith.constant 0 : index
    %188 = vector.load %arg13[%c0_69, %c0_70, %c0_71] : memref<1x16x64xf32, #tpu.memory_space<vmem>>, vector<1x16x64xf32>
    %189 = vector.shape_cast %188 : vector<1x16x64xf32> to vector<16x64xf32>
    %190 = vector.shape_cast %187 : vector<16x64xf32> to vector<1x16x64xf32>
    tpu.vector_store %arg13[%c0_69, %c0_70, %c0_71], %190 {strides = array<i32>} : memref<1x16x64xf32, #tpu.memory_space<vmem>>, vector<1x16x64xf32>,
    return
  }
  func.func @transform_0(%arg0: i32) -> (i32, i32, i32) {
    %c0_i32 = arith.constant 0 : i32
    %c0_i32_0 = arith.constant 0 : i32
    %c0_i32_1 = arith.constant 0 : i32
    return %arg0, %c0_i32, %c0_i32_0 : i32, i32, i32
  }
  func.func @transform_1(%arg0: i32) -> (i32, i32, i32) {
    %c0_i32 = arith.constant 0 : i32
    %c0_i32_0 = arith.constant 0 : i32
    %c0_i32_1 = arith.constant 0 : i32
    return %arg0, %c0_i32, %c0_i32_0 : i32, i32, i32
  }
  func.func @transform_2(%arg0: i32) -> (i32, i32) {
    %c0_i32 = arith.constant 0 : i32
    %c0_i32_0 = arith.constant 0 : i32
    %c0_i32_1 = arith.constant 0 : i32
    return %c0_i32, %c0_i32_0 : i32, i32
  }
  func.func @transform_3(%arg0: i32) -> (i32, i32) {
    %c0_i32 = arith.constant 0 : i32
    %c0_i32_0 = arith.constant 0 : i32
    %c0_i32_1 = arith.constant 0 : i32
    return %c0_i32, %c0_i32_0 : i32, i32
  }
  func.func @transform_4(%arg0: i32) -> (i32, i32) {
    %c0_i32 = arith.constant 0 : i32
    %c0_i32_0 = arith.constant 0 : i32
    %c0_i32_1 = arith.constant 0 : i32
    return %c0_i32, %c0_i32_0 : i32, i32
  }
  func.func @transform_5(%arg0: i32) -> (i32, i32) {
    %c0_i32 = arith.constant 0 : i32
    %c0_i32_0 = arith.constant 0 : i32
    %c0_i32_1 = arith.constant 0 : i32
    return %c0_i32, %c0_i32_0 : i32, i32
  }
  func.func @transform_6(%arg0: i32) -> (i32, i32) {
    %c0_i32 = arith.constant 0 : i32
    %c0_i32_0 = arith.constant 0 : i32
    %c0_i32_1 = arith.constant 0 : i32
    return %c0_i32, %c0_i32_0 : i32, i32
  }
  func.func @transform_7(%arg0: i32) -> (i32, i32) {
    %c0_i32 = arith.constant 0 : i32
    %c0_i32_0 = arith.constant 0 : i32
    %c0_i32_1 = arith.constant 0 : i32
    return %c0_i32, %c0_i32_0 : i32, i32
  }
  func.func @transform_8(%arg0: i32) -> (i32, i32) {
    %c0_i32 = arith.constant 0 : i32
    %c0_i32_0 = arith.constant 0 : i32
    %c0_i32_1 = arith.constant 0 : i32
    return %c0_i32, %c0_i32_0 : i32, i32
  }
  func.func @transform_9(%arg0: i32) -> (i32, i32) {
    %c0_i32 = arith.constant 0 : i32
    %c0_i32_0 = arith.constant 0 : i32
    %c0_i32_1 = arith.constant 0 : i32
    return %c0_i32, %c0_i32_0 : i32, i32
  }
  func.func @transform_10(%arg0: i32) -> (i32, i32) {
    %c0_i32 = arith.constant 0 : i32
    %c0_i32_0 = arith.constant 0 : i32
    %c0_i32_1 = arith.constant 0 : i32
    return %c0_i32, %c0_i32_0 : i32, i32
  }
  func.func @transform_11(%arg0: i32) -> (i32, i32, i32) {
    %c0_i32 = arith.constant 0 : i32
    %c0_i32_0 = arith.constant 0 : i32
    %c0_i32_1 = arith.constant 0 : i32
    return %arg0, %c0_i32, %c0_i32_0 : i32, i32, i32
  }
  func.func @transform_12(%arg0: i32) -> (i32, i32, i32) {
    %c0_i32 = arith.constant 0 : i32
    %c0_i32_0 = arith.constant 0 : i32
    %c0_i32_1 = arith.constant 0 : i32
    return %arg0, %c0_i32, %c0_i32_0 : i32, i32, i32
  }
}

</mosaic_0001>

<llo_original>
// kernel: fun1_forward.1
$region0: #{fun1_forward.1}
  #allocation0 [shape = 'u32[]', space=smem, size = 0x4, offset = 0x4, fixed_abs, tag = 'smem constant byte address 0x4 - core index']
  #allocation1 [shape = 'u32[144,128]{1,0:T(1,128)}', space=vmem, size = 0x12000, scoped, tag = 'internal scratch']
  %s0 = inlined_call_operand.vmem [shape: f32[2,16,64], index: 0, kind: input, shape index: {}]
  %s1 = inlined_call_operand.vmem [shape: f32[2,16,64], index: 1, kind: input, shape index: {}]
  %s2 = inlined_call_operand.vmem [shape: f32[1,64], index: 2, kind: input, shape index: {}]
  %s3 = inlined_call_operand.vmem [shape: f32[1,64], index: 3, kind: input, shape index: {}]
  %s4 = inlined_call_operand.vmem [shape: bf16[64,64], index: 4, kind: input, shape index: {}]
  %s5 = inlined_call_operand.vmem [shape: bf16[64,64], index: 5, kind: input, shape index: {}]
  %s6 = inlined_call_operand.vmem [shape: bf16[64,64], index: 6, kind: input, shape index: {}]
  %s7 = inlined_call_operand.vmem [shape: bf16[16,16], index: 7, kind: input, shape index: {}]
  %s8 = inlined_call_operand.vmem [shape: f32[1,64], index: 8, kind: input, shape index: {}]
  %s9 = inlined_call_operand.vmem [shape: bf16[16,16], index: 9, kind: input, shape index: {}]
  %s10 = inlined_call_operand.vmem [shape: f32[1,64], index: 10, kind: input, shape index: {}]
  %s11 = inlined_call_operand.hbm [shape: f32[2,16,64], index: 11, kind: output, shape index: {0}]
  %s12 = inlined_call_operand.hbm [shape: f32[2,16,64], index: 12, kind: output, shape index: {1}]
  %13 = xla_tuple %s11, %s12
  %s14 = sld [smem:[#allocation0]]
  $region85: #{fun1_forward.1} parent=0
    _
  %s16 = ssub.s32 1, %s14
  %s17 = scalar_select 0, %s16, %s14
  $region1: #{fun1_forward.1} parent=0
    #allocation2 [shape = 'u8[16384]{0}', space=vmem, size = 0x4000, scoped, tag = 'output window, operand 0']
    #allocation3 [shape = 's32[2]{0}', space=sflag, size = 0x8, scoped, tag = 'scoped memory for fun1_forward.1']
    #allocation4 [shape = 'u8[16384]{0}', space=vmem, size = 0x4000, scoped, tag = 'output window, operand 1']
    #allocation5 [shape = 's32[2]{0}', space=sflag, size = 0x8, scoped, tag = 'scoped memory for fun1_forward.1']
    %18 = vsyncpa [#allocation3], 0
    %s19 = scalar_lea.sflag [#allocation3], 1
    %20 = vsyncpa %s19, 0
    %21 = vsyncpa [#allocation5], 0
    %s22 = scalar_lea.sflag [#allocation5], 1
    %23 = vsyncpa %s22, 0
    loop: start=0, step=1, limit=4
    $region2: #{fun1_forward.1} parent=1 // loop_pre_header
      _
    $region3: #{fun1_forward.1} parent=1 // loop_header
      %s25 = sphi 0, %s29
      %p26 = scmp.ge.s32.totalorder %s25, 4
      %s35 = sphi 0, %s37
      %s38 = sphi 0, %s35
      %s39 = sphi 0, %s38
      %s55 = sphi 0, %s39
      %s61 = sphi 0, %s63
      %s64 = sphi 0, %s61
      %s65 = sphi 0, %s64
      %s81 = sphi 0, %s65
      %s85 = sphi 0, %s85
      %s87 = sphi 0, %s85
      %s88 = sphi 0, %s87
      %s102 = sphi 0, %s88
      %s106 = sphi 0, %s106
      %s108 = sphi 0, %s106
      %s109 = sphi 0, %s108
      %s123 = sphi 0, %s109
      %s127 = sphi 0, %s127
      %s129 = sphi 0, %s127
      %s130 = sphi 0, %s129
      %s144 = sphi 0, %s130
      %s148 = sphi 0, %s148
      %s150 = sphi 0, %s148
      %s151 = sphi 0, %s150
      %s165 = sphi 0, %s151
      %s169 = sphi 0, %s169
      %s171 = sphi 0, %s169
      %s172 = sphi 0, %s171
      %s186 = sphi 0, %s172
      %s190 = sphi 0, %s190
      %s192 = sphi 0, %s190
      %s193 = sphi 0, %s192
      %s207 = sphi 0, %s193
      %s211 = sphi 0, %s211
      %s213 = sphi 0, %s211
      %s214 = sphi 0, %s213
      %s228 = sphi 0, %s214
      %s232 = sphi 0, %s232
      %s234 = sphi 0, %s232
      %s235 = sphi 0, %s234
      %s249 = sphi 0, %s235
      %s253 = sphi 0, %s253
      %s255 = sphi 0, %s253
      %s256 = sphi 0, %s255
      %s270 = sphi 0, %s256
      %s276 = sphi 0, %s278
      %s279 = sphi 0, %s276
      %s280 = sphi 0, %s279
      %s296 = sphi 0, %s280
      %s302 = sphi 0, %s304
      %s305 = sphi 0, %s302
      %s306 = sphi 0, %s305
      %s322 = sphi 0, %s306
    $region4: #{fun1_forward.1} parent=1 // loop_header_branch
      %28 = sbr.rel (%p26) target = $region8
    $region5: #{fun1_forward.1} parent=1 // loop_body
      %s30 = ssub.s32 %s25, 1
      %s31 = ssub.s32 %s25, 2
      %s32 = sadd.s32 %s25, 1
      %s33 = ssub.s32 %s25, %s32
      %p34 = scmp.eq.s32.totalorder %s33, 0
      %s36 = sadd.s32 %s35, 1
      %s37 = scalar_select %p34, %s35, %s36
      %p40 = pneg %p34
      %p41 = scmp.eq.s32.totalorder %s25, 1
      %p42 = por %p40, %p41
      %p43 = scmp.ne.s32.totalorder %s35, %s38
      %p44 = scmp.eq.s32.totalorder %s25, 0
      %p45 = por %p43, %p44
      %p46 = scmp.ne.s32.totalorder %s35, %s38
      %p47 = scmp.eq.s32.totalorder %s30, 1
      %p48 = por %p46, %p47
      %p49 = scmp.ne.s32.totalorder %s38, %s39
      %p50 = scmp.eq.s32.totalorder %s30, 0
      %p51 = por %p49, %p50
      %p52 = scmp.ne.s32.totalorder %s38, %s39
      %p53 = scmp.eq.s32.totalorder %s31, 1
      %p54 = por %p52, %p53
      %p56 = scmp.ne.s32.totalorder %s39, %s55
      %p57 = scmp.eq.s32.totalorder %s31, 0
      %p58 = por %p56, %p57
      %s59 = ssub.s32 %s25, %s32
      %p60 = scmp.eq.s32.totalorder %s59, 0
      %s62 = sadd.s32 %s61, 1
      %s63 = scalar_select %p60, %s61, %s62
      %p66 = pneg %p60
      %p67 = scmp.eq.s32.totalorder %s25, 1
      %p68 = por %p66, %p67
      %p69 = scmp.ne.s32.totalorder %s61, %s64
      %p70 = scmp.eq.s32.totalorder %s25, 0
      %p71 = por %p69, %p70
      %p72 = scmp.ne.s32.totalorder %s61, %s64
      %p73 = scmp.eq.s32.totalorder %s30, 1
      %p74 = por %p72, %p73
      %p75 = scmp.ne.s32.totalorder %s64, %s65
      %p76 = scmp.eq.s32.totalorder %s30, 0
      %p77 = por %p75, %p76
      %p78 = scmp.ne.s32.totalorder %s64, %s65
      %p79 = scmp.eq.s32.totalorder %s31, 1
      %p80 = por %p78, %p79
      %p82 = scmp.ne.s32.totalorder %s65, %s81
      %p83 = scmp.eq.s32.totalorder %s31, 0
      %p84 = por %p82, %p83
      %s86 = sadd.s32 %s85, 1
      %p89 = scmp.eq.s32.totalorder %s25, 1
      %p90 = scmp.ne.s32.totalorder %s85, %s87
      %p91 = scmp.eq.s32.totalorder %s25, 0
      %p92 = por %p90, %p91
      %p93 = scmp.ne.s32.totalorder %s85, %s87
      %p94 = scmp.eq.s32.totalorder %s30, 1
      %p95 = por %p93, %p94
      %p96 = scmp.ne.s32.totalorder %s87, %s88
      %p97 = scmp.eq.s32.totalorder %s30, 0
      %p98 = por %p96, %p97
      %p99 = scmp.ne.s32.totalorder %s87, %s88
      %p100 = scmp.eq.s32.totalorder %s31, 1
      %p101 = por %p99, %p100
      %p103 = scmp.ne.s32.totalorder %s88, %s102
      %p104 = scmp.eq.s32.totalorder %s31, 0
      %p105 = por %p103, %p104
      %s107 = sadd.s32 %s106, 1
      %p110 = scmp.eq.s32.totalorder %s25, 1
      %p111 = scmp.ne.s32.totalorder %s106, %s108
      %p112 = scmp.eq.s32.totalorder %s25, 0
      %p113 = por %p111, %p112
      %p114 = scmp.ne.s32.totalorder %s106, %s108
      %p115 = scmp.eq.s32.totalorder %s30, 1
      %p116 = por %p114, %p115
      %p117 = scmp.ne.s32.totalorder %s108, %s109
      %p118 = scmp.eq.s32.totalorder %s30, 0
      %p119 = por %p117, %p118
      %p120 = scmp.ne.s32.totalorder %s108, %s109
      %p121 = scmp.eq.s32.totalorder %s31, 1
      %p122 = por %p120, %p121
      %p124 = scmp.ne.s32.totalorder %s109, %s123
      %p125 = scmp.eq.s32.totalorder %s31, 0
      %p126 = por %p124, %p125
      %s128 = sadd.s32 %s127, 1
      %p131 = scmp.eq.s32.totalorder %s25, 1
      %p132 = scmp.ne.s32.totalorder %s127, %s129
      %p133 = scmp.eq.s32.totalorder %s25, 0
      %p134 = por %p132, %p133
      %p135 = scmp.ne.s32.totalorder %s127, %s129
      %p136 = scmp.eq.s32.totalorder %s30, 1
      %p137 = por %p135, %p136
      %p138 = scmp.ne.s32.totalorder %s129, %s130
      %p139 = scmp.eq.s32.totalorder %s30, 0
      %p140 = por %p138, %p139
      %p141 = scmp.ne.s32.totalorder %s129, %s130
      %p142 = scmp.eq.s32.totalorder %s31, 1
      %p143 = por %p141, %p142
      %p145 = scmp.ne.s32.totalorder %s130, %s144
      %p146 = scmp.eq.s32.totalorder %s31, 0
      %p147 = por %p145, %p146
      %s149 = sadd.s32 %s148, 1
      %p152 = scmp.eq.s32.totalorder %s25, 1
      %p153 = scmp.ne.s32.totalorder %s148, %s150
      %p154 = scmp.eq.s32.totalorder %s25, 0
      %p155 = por %p153, %p154
      %p156 = scmp.ne.s32.totalorder %s148, %s150
      %p157 = scmp.eq.s32.totalorder %s30, 1
      %p158 = por %p156, %p157
      %p159 = scmp.ne.s32.totalorder %s150, %s151
      %p160 = scmp.eq.s32.totalorder %s30, 0
      %p161 = por %p159, %p160
      %p162 = scmp.ne.s32.totalorder %s150, %s151
      %p163 = scmp.eq.s32.totalorder %s31, 1
      %p164 = por %p162, %p163
      %p166 = scmp.ne.s32.totalorder %s151, %s165
      %p167 = scmp.eq.s32.totalorder %s31, 0
      %p168 = por %p166, %p167
      %s170 = sadd.s32 %s169, 1
      %p173 = scmp.eq.s32.totalorder %s25, 1
      %p174 = scmp.ne.s32.totalorder %s169, %s171
      %p175 = scmp.eq.s32.totalorder %s25, 0
      %p176 = por %p174, %p175
      %p177 = scmp.ne.s32.totalorder %s169, %s171
      %p178 = scmp.eq.s32.totalorder %s30, 1
      %p179 = por %p177, %p178
      %p180 = scmp.ne.s32.totalorder %s171, %s172
      %p181 = scmp.eq.s32.totalorder %s30, 0
      %p182 = por %p180, %p181
      %p183 = scmp.ne.s32.totalorder %s171, %s172
      %p184 = scmp.eq.s32.totalorder %s31, 1
      %p185 = por %p183, %p184
      %p187 = scmp.ne.s32.totalorder %s172, %s186
      %p188 = scmp.eq.s32.totalorder %s31, 0
      %p189 = por %p187, %p188
      %s191 = sadd.s32 %s190, 1
      %p194 = scmp.eq.s32.totalorder %s25, 1
      %p195 = scmp.ne.s32.totalorder %s190, %s192
      %p196 = scmp.eq.s32.totalorder %s25, 0
      %p197 = por %p195, %p196
      %p198 = scmp.ne.s32.totalorder %s190, %s192
      %p199 = scmp.eq.s32.totalorder %s30, 1
      %p200 = por %p198, %p199
      %p201 = scmp.ne.s32.totalorder %s192, %s193
      %p202 = scmp.eq.s32.totalorder %s30, 0
      %p203 = por %p201, %p202
      %p204 = scmp.ne.s32.totalorder %s192, %s193
      %p205 = scmp.eq.s32.totalorder %s31, 1
      %p206 = por %p204, %p205
      %p208 = scmp.ne.s32.totalorder %s193, %s207
      %p209 = scmp.eq.s32.totalorder %s31, 0
      %p210 = por %p208, %p209
      %s212 = sadd.s32 %s211, 1
      %p215 = scmp.eq.s32.totalorder %s25, 1
      %p216 = scmp.ne.s32.totalorder %s211, %s213
      %p217 = scmp.eq.s32.totalorder %s25, 0
      %p218 = por %p216, %p217
      %p219 = scmp.ne.s32.totalorder %s211, %s213
      %p220 = scmp.eq.s32.totalorder %s30, 1
      %p221 = por %p219, %p220
      %p222 = scmp.ne.s32.totalorder %s213, %s214
      %p223 = scmp.eq.s32.totalorder %s30, 0
      %p224 = por %p222, %p223
      %p225 = scmp.ne.s32.totalorder %s213, %s214
      %p226 = scmp.eq.s32.totalorder %s31, 1
      %p227 = por %p225, %p226
      %p229 = scmp.ne.s32.totalorder %s214, %s228
      %p230 = scmp.eq.s32.totalorder %s31, 0
      %p231 = por %p229, %p230
      %s233 = sadd.s32 %s232, 1
      %p236 = scmp.eq.s32.totalorder %s25, 1
      %p237 = scmp.ne.s32.totalorder %s232, %s234
      %p238 = scmp.eq.s32.totalorder %s25, 0
      %p239 = por %p237, %p238
      %p240 = scmp.ne.s32.totalorder %s232, %s234
      %p241 = scmp.eq.s32.totalorder %s30, 1
      %p242 = por %p240, %p241
      %p243 = scmp.ne.s32.totalorder %s234, %s235
      %p244 = scmp.eq.s32.totalorder %s30, 0
      %p245 = por %p243, %p244
      %p246 = scmp.ne.s32.totalorder %s234, %s235
      %p247 = scmp.eq.s32.totalorder %s31, 1
      %p248 = por %p246, %p247
      %p250 = scmp.ne.s32.totalorder %s235, %s249
      %p251 = scmp.eq.s32.totalorder %s31, 0
      %p252 = por %p250, %p251
      %s254 = sadd.s32 %s253, 1
      %p257 = scmp.eq.s32.totalorder %s25, 1
      %p258 = scmp.ne.s32.totalorder %s253, %s255
      %p259 = scmp.eq.s32.totalorder %s25, 0
      %p260 = por %p258, %p259
      %p261 = scmp.ne.s32.totalorder %s253, %s255
      %p262 = scmp.eq.s32.totalorder %s30, 1
      %p263 = por %p261, %p262
      %p264 = scmp.ne.s32.totalorder %s255, %s256
      %p265 = scmp.eq.s32.totalorder %s30, 0
      %p266 = por %p264, %p265
      %p267 = scmp.ne.s32.totalorder %s255, %s256
      %p268 = scmp.eq.s32.totalorder %s31, 1
      %p269 = por %p267, %p268
      %p271 = scmp.ne.s32.totalorder %s256, %s270
      %p272 = scmp.eq.s32.totalorder %s31, 0
      %p273 = por %p271, %p272
      %s274 = ssub.s32 %s25, %s32
      %p275 = scmp.eq.s32.totalorder %s274, 0
      %s277 = sadd.s32 %s276, 1
      %s278 = scalar_select %p275, %s276, %s277
      %p281 = pneg %p275
      %p282 = scmp.eq.s32.totalorder %s25, 1
      %p283 = por %p281, %p282
      %p284 = scmp.ne.s32.totalorder %s276, %s279
      %p285 = scmp.eq.s32.totalorder %s25, 0
      %p286 = por %p284, %p285
      %p287 = scmp.ne.s32.totalorder %s276, %s279
      %p288 = scmp.eq.s32.totalorder %s30, 1
      %p289 = por %p287, %p288
      %p290 = scmp.ne.s32.totalorder %s279, %s280
      %p291 = scmp.eq.s32.totalorder %s30, 0
      %p292 = por %p290, %p291
      %p293 = scmp.ne.s32.totalorder %s279, %s280
      %p294 = scmp.eq.s32.totalorder %s31, 1
      %p295 = por %p293, %p294
      %p297 = scmp.ne.s32.totalorder %s280, %s296
      %p298 = scmp.eq.s32.totalorder %s31, 0
      %p299 = por %p297, %p298
      %s300 = ssub.s32 %s25, %s32
      %p301 = scmp.eq.s32.totalorder %s300, 0
      %s303 = sadd.s32 %s302, 1
      %s304 = scalar_select %p301, %s302, %s303
      %p307 = pneg %p301
      %p308 = scmp.eq.s32.totalorder %s25, 1
      %p309 = por %p307, %p308
      %p310 = scmp.ne.s32.totalorder %s302, %s305
      %p311 = scmp.eq.s32.totalorder %s25, 0
      %p312 = por %p310, %p311
      %p313 = scmp.ne.s32.totalorder %s302, %s305
      %p314 = scmp.eq.s32.totalorder %s30, 1
      %p315 = por %p313, %p314
      %p316 = scmp.ne.s32.totalorder %s305, %s306
      %p317 = scmp.eq.s32.totalorder %s30, 0
      %p318 = por %p316, %p317
      %p319 = scmp.ne.s32.totalorder %s305, %s306
      %p320 = scmp.eq.s32.totalorder %s31, 1
      %p321 = por %p319, %p320
      %p323 = scmp.ne.s32.totalorder %s306, %s322
      %p324 = scmp.eq.s32.totalorder %s31, 0
      %p325 = por %p323, %p324
      %p326 = scmp.le.s32.totalorder 1, %s25
      %p327 = scmp.lt.s32.totalorder %s25, 3
      %p328 = pnand %p326, %p327
      %p329 = pneg %p328
      // Predicated region
      $region9: #{fun1_forward.1} parent=5 // pred_check
        _
      $region10: #{fun1_forward.1} parent=5 // pred_check_branch
        %331 = sbr.rel (%p328) target = $region12
      $region11: #{fun1_forward.1} parent=5 // pred_region
        %s332 = ssub.s32 %s25, 1
        // Predicated region
        $region13: #{fun1_forward.1} parent=11 // pred_check
          %p333 = pneg %p98
        $region14: #{fun1_forward.1} parent=11 // pred_check_branch
          %335 = sbr.rel (%p333) target = $region16
        $region15: #{fun1_forward.1} parent=11 // pred_region
          _
        $region16: #{fun1_forward.1} parent=11 // pred_fallthru
          _
        // Predicated region
        $region17: #{fun1_forward.1} parent=11 // pred_check
          %p336 = pneg %p119
        $region18: #{fun1_forward.1} parent=11 // pred_check_branch
          %338 = sbr.rel (%p336) target = $region20
        $region19: #{fun1_forward.1} parent=11 // pred_region
          _
        $region20: #{fun1_forward.1} parent=11 // pred_fallthru
          _
        // Predicated region
        $region21: #{fun1_forward.1} parent=11 // pred_check
          %p339 = pneg %p140
        $region22: #{fun1_forward.1} parent=11 // pred_check_branch
          %341 = sbr.rel (%p339) target = $region24
        $region23: #{fun1_forward.1} parent=11 // pred_region
          _
        $region24: #{fun1_forward.1} parent=11 // pred_fallthru
          _
        // Predicated region
        $region25: #{fun1_forward.1} parent=11 // pred_check
          %p342 = pneg %p161
        $region26: #{fun1_forward.1} parent=11 // pred_check_branch
          %344 = sbr.rel (%p342) target = $region28
        $region27: #{fun1_forward.1} parent=11 // pred_region
          _
        $region28: #{fun1_forward.1} parent=11 // pred_fallthru
          _
        // Predicated region
        $region29: #{fun1_forward.1} parent=11 // pred_check
          %p345 = pneg %p182
        $region30: #{fun1_forward.1} parent=11 // pred_check_branch
          %347 = sbr.rel (%p345) target = $region32
        $region31: #{fun1_forward.1} parent=11 // pred_region
          _
        $region32: #{fun1_forward.1} parent=11 // pred_fallthru
          _
        // Predicated region
        $region33: #{fun1_forward.1} parent=11 // pred_check
          %p348 = pneg %p203
        $region34: #{fun1_forward.1} parent=11 // pred_check_branch
          %350 = sbr.rel (%p348) target = $region36
        $region35: #{fun1_forward.1} parent=11 // pred_region
          _
        $region36: #{fun1_forward.1} parent=11 // pred_fallthru
          _
        // Predicated region
        $region37: #{fun1_forward.1} parent=11 // pred_check
          %p351 = pneg %p224
        $region38: #{fun1_forward.1} parent=11 // pred_check_branch
          %353 = sbr.rel (%p351) target = $region40
        $region39: #{fun1_forward.1} parent=11 // pred_region
          _
        $region40: #{fun1_forward.1} parent=11 // pred_fallthru
          _
        // Predicated region
        $region41: #{fun1_forward.1} parent=11 // pred_check
          %p354 = pneg %p245
        $region42: #{fun1_forward.1} parent=11 // pred_check_branch
          %356 = sbr.rel (%p354) target = $region44
        $region43: #{fun1_forward.1} parent=11 // pred_region
          _
        $region44: #{fun1_forward.1} parent=11 // pred_fallthru
          _
        // Predicated region
        $region45: #{fun1_forward.1} parent=11 // pred_check
          %p357 = pneg %p266
        $region46: #{fun1_forward.1} parent=11 // pred_check_branch
          %359 = sbr.rel (%p357) target = $region48
        $region47: #{fun1_forward.1} parent=11 // pred_region
          _
        $region48: #{fun1_forward.1} parent=11 // pred_fallthru
          _
      $region12: #{fun1_forward.1} parent=5 // pred_fallthru
        _
      %p360 = scmp.lt.s32.totalorder %s25, 2
      // Predicated region
      $region49: #{fun1_forward.1} parent=5 // pred_check
        %p361 = pneg %p360
      $region50: #{fun1_forward.1} parent=5 // pred_check_branch
        %363 = sbr.rel (%p361) target = $region52
      $region51: #{fun1_forward.1} parent=5 // pred_region
        // Predicated region
        $region53: #{fun1_forward.1} parent=51 // pred_check
          %p364 = pneg %p45
        $region54: #{fun1_forward.1} parent=51 // pred_check_branch
          %366 = sbr.rel (%p364) target = $region56
        $region55: #{fun1_forward.1} parent=51 // pred_region
          %p367 = scmp.lt.s32.totalorder %s25, 1
          %s368 = scalar_select %p367, %s25, 1
          %s369 = smul.addr %s368, 2
          %s370 = smul.addr %s369, 8
          %s371 = scalar_lea.vmem %s0, %s370
        $region56: #{fun1_forward.1} parent=51 // pred_fallthru
          _
        // Predicated region
        $region57: #{fun1_forward.1} parent=51 // pred_check
          %p372 = pneg %p71
        $region58: #{fun1_forward.1} parent=51 // pred_check_branch
          %374 = sbr.rel (%p372) target = $region60
        $region59: #{fun1_forward.1} parent=51 // pred_region
          %p375 = scmp.lt.s32.totalorder %s25, 1
          %s376 = scalar_select %p375, %s25, 1
          %s377 = smul.addr %s376, 2
          %s378 = smul.addr %s377, 8
          %s379 = scalar_lea.vmem %s1, %s378
        $region60: #{fun1_forward.1} parent=51 // pred_fallthru
          _
      $region52: #{fun1_forward.1} parent=5 // pred_fallthru
        _
      %p380 = scmp.le.s32.totalorder 1, %s25
      %p381 = scmp.lt.s32.totalorder %s25, 3
      %p382 = pnand %p380, %p381
      %p383 = pneg %p382
      // Predicated region
      $region61: #{fun1_forward.1} parent=5 // pred_check
        _
      $region62: #{fun1_forward.1} parent=5 // pred_check_branch
        %385 = sbr.rel (%p382) target = $region64
      $region63: #{fun1_forward.1} parent=5 // pred_region
        %s386 = ssub.s32 %s25, 1
        %p387 = scmp.lt.s32.totalorder %s30, 1
        %s388 = scalar_select %p387, %s30, 1
        %s389 = smul.addr %s388, 2
        %s390 = smul.addr %s389, 8
        %s391 = scalar_lea.vmem %s0, %s390
        %p392 = pneg %p51
        %p393 = pneg %p48
        %p394 = scmp.lt.s32.totalorder %s30, 1
        %s395 = scalar_select %p394, %s30, 1
        %s396 = smul.addr %s395, 2
        %s397 = smul.addr %s396, 8
        %s398 = scalar_lea.vmem %s1, %s397
        %p399 = pneg %p77
        %p400 = pneg %p74
        %p401 = pneg %p98
        %p402 = pneg %p95
        %p403 = pneg %p119
        %p404 = pneg %p116
        %p405 = pneg %p140
        %p406 = pneg %p137
        %p407 = pneg %p161
        %p408 = pneg %p158
        %p409 = pneg %p182
        %p410 = pneg %p179
        %p411 = pneg %p203
        %p412 = pneg %p200
        %p413 = pneg %p224
        %p414 = pneg %p221
        %p415 = pneg %p245
        %p416 = pneg %p242
        %p417 = pneg %p266
        %p418 = pneg %p263
        %p419 = pneg %p292
        %p420 = pneg %p289
        %s421 = sand.u32 %s279, 1
        %s422 = scalar_lea.sflag [#allocation3], %s421
        %s423 = sand.u32 %s279, 1
        %s424 = smul.addr %s423, 16
        %s425 = scalar_lea.vmem [#allocation2], %s424
        %p426 = pneg %p318
        %p427 = pneg %p315
        %s428 = sand.u32 %s305, 1
        %s429 = scalar_lea.sflag [#allocation5], %s428
        %s430 = sand.u32 %s305, 1
        %s431 = smul.addr %s430, 16
        %s432 = scalar_lea.vmem [#allocation4], %s431
        %p433 = scmp.lt.s32.totalorder %s30, 1
        %s434 = scalar_select %p433, %s30, 1
        %s435 = smul.addr %s434, 2
        %s436 = smul.addr %s435, 8
        %s437 = scalar_lea.vmem %s0, %s436
        %p438 = scmp.lt.s32.totalorder %s30, 1
        %s439 = scalar_select %p438, %s30, 1
        %s440 = smul.addr %s439, 2
        %s441 = smul.addr %s440, 8
        %s442 = scalar_lea.vmem %s1, %s441
        %v444 = vld [vmem:[%s437] sm:$0xff]
        %v445 = vld [vmem:[%s437 + $0x8] sm:$0xff]
        %v446 = vld [vmem:[%s442] sm:$0xff]
        %v447 = vld [vmem:[%s442 + $0x8] sm:$0xff]
        %v448 = vsub.f32 %v444, %v446
        %v449 = vsub.f32 %v445, %v447
        %v450 = vld [vmem:[%s2] sm:$0x1]
        %v451 = vld [vmem:[%s3] sm:$0x1]
        %vm452 = vcmask 523264
        %v453 = vsel %vm452, %v444, 0.0
        %454 = vadd.xlane.f32.xlu0 %v453
        %v455 = vpop.xlane.xlu0 %454
        %v456 = vsel %vm452, %v445, 0.0
        %457 = vadd.xlane.f32.xlu0 %v456
        %v458 = vpop.xlane.xlu0 %457
        %v459 = vrcp.pop 64.0
        %v460 = vmul.f32 %v455, %v459
        %v461 = vmul.f32 %v458, %v459
        %v462 = vsub.f32 %v444, %v460
        %v463 = vsub.f32 %v445, %v461
        %v464 = vmul.f32 %v462, %v462
        %v465 = vmul.f32 %v463, %v463
        %v466 = vsel %vm452, %v464, 0.0
        %467 = vadd.xlane.f32.xlu0 %v466
        %v468 = vpop.xlane.xlu0 %467
        %v469 = vsel %vm452, %v465, 0.0
        %470 = vadd.xlane.f32.xlu0 %v469
        %v471 = vpop.xlane.xlu0 %470
        %v472 = vmul.f32 %v468, %v459
        %v473 = vmul.f32 %v471, %v459
        %v474 = vadd.f32 %v472, 1e-05
        %v475 = vadd.f32 %v473, 1e-05
        %v476 = vrsqrt.pop %v474
        %v477 = vrsqrt.pop %v475
        %v478 = vmul.f32 %v462, %v476
        %v479 = vmul.f32 %v463, %v477
        %v481 = vlaneseq
        %v482 = vshrl.u32 %v481, 7
        %v483 = vsub.s32 0, %v482
        %v484 = vrot.slane %v450, %v483
        %v486 = vmul.f32 %v478, %v484
        %v487 = vmul.f32 %v479, %v484
        %v489 = vlaneseq
        %v490 = vshrl.u32 %v489, 7
        %v491 = vsub.s32 0, %v490
        %v492 = vrot.slane %v451, %v491
        %v494 = vadd.f32 %v486, %v492
        %v495 = vadd.f32 %v487, %v492
        %v496 = vpack.c.bf16 %v495, %v494
        %v497 = vsel %vm452, %v446, 0.0
        %498 = vadd.xlane.f32.xlu0 %v497
        %v499 = vpop.xlane.xlu0 %498
        %v500 = vsel %vm452, %v447, 0.0
        %501 = vadd.xlane.f32.xlu0 %v500
        %v502 = vpop.xlane.xlu0 %501
        %v503 = vmul.f32 %v499, %v459
        %v504 = vmul.f32 %v502, %v459
        %v505 = vsub.f32 %v446, %v503
        %v506 = vsub.f32 %v447, %v504
        %v507 = vmul.f32 %v505, %v505
        %v508 = vmul.f32 %v506, %v506
        %v509 = vsel %vm452, %v507, 0.0
        %510 = vadd.xlane.f32.xlu0 %v509
        %v511 = vpop.xlane.xlu0 %510
        %v512 = vsel %vm452, %v508, 0.0
        %513 = vadd.xlane.f32.xlu0 %v512
        %v514 = vpop.xlane.xlu0 %513
        %v515 = vmul.f32 %v511, %v459
        %v516 = vmul.f32 %v514, %v459
        %v517 = vadd.f32 %v515, 1e-05
        %v518 = vadd.f32 %v516, 1e-05
        %v519 = vrsqrt.pop %v517
        %v520 = vrsqrt.pop %v518
        %v521 = vmul.f32 %v505, %v519
        %v522 = vmul.f32 %v506, %v520
        %v523 = vmul.f32 %v521, %v484
        %v524 = vmul.f32 %v522, %v484
        %v525 = vadd.f32 %v523, %v492
        %v526 = vadd.f32 %v524, %v492
        %v527 = vpack.c.bf16 %v526, %v525
        %v528 = vsel %vm452, %v448, 0.0
        %529 = vadd.xlane.f32.xlu0 %v528
        %v530 = vpop.xlane.xlu0 %529
        %v531 = vsel %vm452, %v449, 0.0
        %532 = vadd.xlane.f32.xlu0 %v531
        %v533 = vpop.xlane.xlu0 %532
        %v534 = vmul.f32 %v530, %v459
        %v535 = vmul.f32 %v533, %v459
        %v536 = vsub.f32 %v448, %v534
        %v537 = vsub.f32 %v449, %v535
        %v538 = vmul.f32 %v536, %v536
        %v539 = vmul.f32 %v537, %v537
        %v540 = vsel %vm452, %v538, 0.0
        %541 = vadd.xlane.f32.xlu0 %v540
        %v542 = vpop.xlane.xlu0 %541
        %v543 = vsel %vm452, %v539, 0.0
        %544 = vadd.xlane.f32.xlu0 %v543
        %v545 = vpop.xlane.xlu0 %544
        %v546 = vmul.f32 %v542, %v459
        %v547 = vmul.f32 %v545, %v459
        %v548 = vadd.f32 %v546, 1e-05
        %v549 = vadd.f32 %v547, 1e-05
        %v550 = vrsqrt.pop %v548
        %v551 = vrsqrt.pop %v549
        %v552 = vmul.f32 %v536, %v550
        %v553 = vmul.f32 %v537, %v551
        %v554 = vmul.f32 %v552, %v484
        %v555 = vmul.f32 %v553, %v484
        %v556 = vadd.f32 %v554, %v492
        %v557 = vadd.f32 %v555, %v492
        %v558 = vpack.c.bf16 %v557, %v556
        %v559 = vld [vmem:[%s4] sm:$0xf]
        %v560 = vld [vmem:[%s4 + $0x4] sm:$0xf]
        %v561 = vld [vmem:[%s4 + $0x8] sm:$0xf]
        %v562 = vld [vmem:[%s4 + $0xc] sm:$0xf]
        %v563 = vld [vmem:[%s4 + $0x10] sm:$0xf]
        %v564 = vld [vmem:[%s4 + $0x14] sm:$0xf]
        %v565 = vld [vmem:[%s4 + $0x18] sm:$0xf]
        %v566 = vld [vmem:[%s4 + $0x1c] sm:$0xf]
        %v575 = vunpack.c.l.b16 %v559
        %v576 = vunpack.c.l.b16 %v560
        %v577 = vunpack.c.l.b16 %v561
        %v578 = vunpack.c.l.b16 %v562
        %v579 = vunpack.c.l.b16 %v563
        %v580 = vunpack.c.l.b16 %v564
        %v581 = vunpack.c.l.b16 %v565
        %v582 = vunpack.c.l.b16 %v566
        %v583 = vpack.c.b16 %v576, %v575
        %v584 = vpack.c.b16 %v578, %v577
        %v585 = vpack.c.b16 %v580, %v579
        %v586 = vpack.c.b16 %v582, %v581
        %v592 = vsel %vm452, %v496, 0
        %594 = vmatprep.subr.bf16.mxu0 0
        %595 = vmatpush1.bf16.msra.mxu0 %v583
        %596 = vmatprep.subr.bf16.mxu0 0
        %597 = vmatpush1.bf16.msra.mxu0 %v584
        %598 = vmatprep.subr.bf16.mxu0 0
        %599 = vmatpush1.bf16.msra.mxu0 %v585
        %600 = vmatprep.subr.bf16.mxu0 0
        %601 = vmatpush1.bf16.msra.mxu0 %v586
        %602 = vmatprep.subr.bf16.mxu0 0
        %603 = vmatpush1.bf16.msra.mxu0 0
        %604 = vmatprep.subr.bf16.mxu0 0
        %605 = vmatpush1.bf16.msra.mxu0 0
        %606 = vmatprep.subr.bf16.mxu0 0
        %607 = vmatpush1.bf16.msra.mxu0 0
        %608 = vmatprep.subr.bf16.mxu0 0
        %609 = vmatpush1.bf16.msra.mxu0 0
        %610 = vmatprep.subr.bf16.mxu0 0
        %611 = vmatpush1.bf16.msra.mxu0 0
        %612 = vmatprep.subr.bf16.mxu0 0
        %613 = vmatpush1.bf16.msra.mxu0 0
        %614 = vmatprep.subr.bf16.mxu0 0
        %615 = vmatpush1.bf16.msra.mxu0 0
        %616 = vmatprep.subr.bf16.mxu0 0
        %617 = vmatpush1.bf16.msra.mxu0 0
        %618 = vmatprep.subr.bf16.mxu0 0
        %619 = vmatpush1.bf16.msra.mxu0 0
        %620 = vmatprep.subr.bf16.mxu0 0
        %621 = vmatpush1.bf16.msra.mxu0 0
        %622 = vmatprep.subr.bf16.mxu0 0
        %623 = vmatpush1.bf16.msra.mxu0 0
        %624 = vmatprep.subr.bf16.mxu0 0
        %625 = vmatpush1.bf16.msra.mxu0 0
        %626 = vmatprep.mubr.bf16.mxu0 0
        %627 = vmatmul.mubr.bf16.gmra.mrb[0].mxu0 %v592
        %v628 = vpop.f32.mrb[0].mxu0
        %v629 = vadd.f32 0.0, %v628
        %v630 = vpop.f32.mrb[0].mxu0
        %v631 = vpop.f32.mrb[0].mxu0
        %v632 = vadd.f32 0.0, %v631
        %v633 = vpop.f32.mrb[0].mxu0
        %634 = vdwg.mxu0
        %v636 = vsel %vm452, %v527, 0
        %638 = vmatprep.subr.bf16.mxu0 0
        %639 = vmatpush1.bf16.msra.mxu0 %v583
        %640 = vmatprep.subr.bf16.mxu0 0
        %641 = vmatpush1.bf16.msra.mxu0 %v584
        %642 = vmatprep.subr.bf16.mxu0 0
        %643 = vmatpush1.bf16.msra.mxu0 %v585
        %644 = vmatprep.subr.bf16.mxu0 0
        %645 = vmatpush1.bf16.msra.mxu0 %v586
        %646 = vmatprep.subr.bf16.mxu0 0
        %647 = vmatpush1.bf16.msra.mxu0 0
        %648 = vmatprep.subr.bf16.mxu0 0
        %649 = vmatpush1.bf16.msra.mxu0 0
        %650 = vmatprep.subr.bf16.mxu0 0
        %651 = vmatpush1.bf16.msra.mxu0 0
        %652 = vmatprep.subr.bf16.mxu0 0
        %653 = vmatpush1.bf16.msra.mxu0 0
        %654 = vmatprep.subr.bf16.mxu0 0
        %655 = vmatpush1.bf16.msra.mxu0 0
        %656 = vmatprep.subr.bf16.mxu0 0
        %657 = vmatpush1.bf16.msra.mxu0 0
        %658 = vmatprep.subr.bf16.mxu0 0
        %659 = vmatpush1.bf16.msra.mxu0 0
        %660 = vmatprep.subr.bf16.mxu0 0
        %661 = vmatpush1.bf16.msra.mxu0 0
        %662 = vmatprep.subr.bf16.mxu0 0
        %663 = vmatpush1.bf16.msra.mxu0 0
        %664 = vmatprep.subr.bf16.mxu0 0
        %665 = vmatpush1.bf16.msra.mxu0 0
        %666 = vmatprep.subr.bf16.mxu0 0
        %667 = vmatpush1.bf16.msra.mxu0 0
        %668 = vmatprep.subr.bf16.mxu0 0
        %669 = vmatpush1.bf16.msra.mxu0 0
        %670 = vmatprep.mubr.bf16.mxu0 0
        %671 = vmatmul.mubr.bf16.gmra.mrb[0].mxu0 %v636
        %v672 = vpop.f32.mrb[0].mxu0
        %v673 = vadd.f32 0.0, %v672
        %v674 = vpop.f32.mrb[0].mxu0
        %v675 = vpop.f32.mrb[0].mxu0
        %v676 = vadd.f32 0.0, %v675
        %v677 = vpop.f32.mrb[0].mxu0
        %678 = vdwg.mxu0
        %v679 = vld [vmem:[%s5] sm:$0xf]
        %v680 = vld [vmem:[%s5 + $0x4] sm:$0xf]
        %v681 = vld [vmem:[%s5 + $0x8] sm:$0xf]
        %v682 = vld [vmem:[%s5 + $0xc] sm:$0xf]
        %v683 = vld [vmem:[%s5 + $0x10] sm:$0xf]
        %v684 = vld [vmem:[%s5 + $0x14] sm:$0xf]
        %v685 = vld [vmem:[%s5 + $0x18] sm:$0xf]
        %v686 = vld [vmem:[%s5 + $0x1c] sm:$0xf]
        %v695 = vunpack.c.l.b16 %v679
        %v696 = vunpack.c.l.b16 %v680
        %v697 = vunpack.c.l.b16 %v681
        %v698 = vunpack.c.l.b16 %v682
        %v699 = vunpack.c.l.b16 %v683
        %v700 = vunpack.c.l.b16 %v684
        %v701 = vunpack.c.l.b16 %v685
        %v702 = vunpack.c.l.b16 %v686
        %v703 = vpack.c.b16 %v696, %v695
        %v704 = vpack.c.b16 %v698, %v697
        %v705 = vpack.c.b16 %v700, %v699
        %v706 = vpack.c.b16 %v702, %v701
        %v712 = vsel %vm452, %v558, 0
        %714 = vmatprep.subr.bf16.mxu0 0
        %715 = vmatpush1.bf16.msra.mxu0 %v703
        %716 = vmatprep.subr.bf16.mxu0 0
        %717 = vmatpush1.bf16.msra.mxu0 %v704
        %718 = vmatprep.subr.bf16.mxu0 0
        %719 = vmatpush1.bf16.msra.mxu0 %v705
        %720 = vmatprep.subr.bf16.mxu0 0
        %721 = vmatpush1.bf16.msra.mxu0 %v706
        %722 = vmatprep.subr.bf16.mxu0 0
        %723 = vmatpush1.bf16.msra.mxu0 0
        %724 = vmatprep.subr.bf16.mxu0 0
        %725 = vmatpush1.bf16.msra.mxu0 0
        %726 = vmatprep.subr.bf16.mxu0 0
        %727 = vmatpush1.bf16.msra.mxu0 0
        %728 = vmatprep.subr.bf16.mxu0 0
        %729 = vmatpush1.bf16.msra.mxu0 0
        %730 = vmatprep.subr.bf16.mxu0 0
        %731 = vmatpush1.bf16.msra.mxu0 0
        %732 = vmatprep.subr.bf16.mxu0 0
        %733 = vmatpush1.bf16.msra.mxu0 0
        %734 = vmatprep.subr.bf16.mxu0 0
        %735 = vmatpush1.bf16.msra.mxu0 0
        %736 = vmatprep.subr.bf16.mxu0 0
        %737 = vmatpush1.bf16.msra.mxu0 0
        %738 = vmatprep.subr.bf16.mxu0 0
        %739 = vmatpush1.bf16.msra.mxu0 0
        %740 = vmatprep.subr.bf16.mxu0 0
        %741 = vmatpush1.bf16.msra.mxu0 0
        %742 = vmatprep.subr.bf16.mxu0 0
        %743 = vmatpush1.bf16.msra.mxu0 0
        %744 = vmatprep.subr.bf16.mxu0 0
        %745 = vmatpush1.bf16.msra.mxu0 0
        %746 = vmatprep.mubr.bf16.mxu0 0
        %747 = vmatmul.mubr.bf16.gmra.mrb[0].mxu0 %v712
        %v748 = vpop.f32.mrb[0].mxu0
        %v749 = vadd.f32 0.0, %v748
        %v750 = vpop.f32.mrb[0].mxu0
        %v751 = vpop.f32.mrb[0].mxu0
        %v752 = vadd.f32 0.0, %v751
        %v753 = vpop.f32.mrb[0].mxu0
        %754 = vdwg.mxu0
        %v755 = vld [vmem:[%s6] sm:$0xf]
        %v756 = vld [vmem:[%s6 + $0x4] sm:$0xf]
        %v757 = vld [vmem:[%s6 + $0x8] sm:$0xf]
        %v758 = vld [vmem:[%s6 + $0xc] sm:$0xf]
        %v759 = vld [vmem:[%s6 + $0x10] sm:$0xf]
        %v760 = vld [vmem:[%s6 + $0x14] sm:$0xf]
        %v761 = vld [vmem:[%s6 + $0x18] sm:$0xf]
        %v762 = vld [vmem:[%s6 + $0x1c] sm:$0xf]
        %v771 = vunpack.c.l.b16 %v755
        %v772 = vunpack.c.l.b16 %v756
        %v773 = vunpack.c.l.b16 %v757
        %v774 = vunpack.c.l.b16 %v758
        %v775 = vunpack.c.l.b16 %v759
        %v776 = vunpack.c.l.b16 %v760
        %v777 = vunpack.c.l.b16 %v761
        %v778 = vunpack.c.l.b16 %v762
        %v779 = vpack.c.b16 %v772, %v771
        %v780 = vpack.c.b16 %v774, %v773
        %v781 = vpack.c.b16 %v776, %v775
        %v782 = vpack.c.b16 %v778, %v777
        %787 = vmatprep.subr.bf16.mxu0 0
        %788 = vmatpush1.bf16.msra.mxu0 %v779
        %789 = vmatprep.subr.bf16.mxu0 0
        %790 = vmatpush1.bf16.msra.mxu0 %v780
        %791 = vmatprep.subr.bf16.mxu0 0
        %792 = vmatpush1.bf16.msra.mxu0 %v781
        %793 = vmatprep.subr.bf16.mxu0 0
        %794 = vmatpush1.bf16.msra.mxu0 %v782
        %795 = vmatprep.subr.bf16.mxu0 0
        %796 = vmatpush1.bf16.msra.mxu0 0
        %797 = vmatprep.subr.bf16.mxu0 0
        %798 = vmatpush1.bf16.msra.mxu0 0
        %799 = vmatprep.subr.bf16.mxu0 0
        %800 = vmatpush1.bf16.msra.mxu0 0
        %801 = vmatprep.subr.bf16.mxu0 0
        %802 = vmatpush1.bf16.msra.mxu0 0
        %803 = vmatprep.subr.bf16.mxu0 0
        %804 = vmatpush1.bf16.msra.mxu0 0
        %805 = vmatprep.subr.bf16.mxu0 0
        %806 = vmatpush1.bf16.msra.mxu0 0
        %807 = vmatprep.subr.bf16.mxu0 0
        %808 = vmatpush1.bf16.msra.mxu0 0
        %809 = vmatprep.subr.bf16.mxu0 0
        %810 = vmatpush1.bf16.msra.mxu0 0
        %811 = vmatprep.subr.bf16.mxu0 0
        %812 = vmatpush1.bf16.msra.mxu0 0
        %813 = vmatprep.subr.bf16.mxu0 0
        %814 = vmatpush1.bf16.msra.mxu0 0
        %815 = vmatprep.subr.bf16.mxu0 0
        %816 = vmatpush1.bf16.msra.mxu0 0
        %817 = vmatprep.subr.bf16.mxu0 0
        %818 = vmatpush1.bf16.msra.mxu0 0
        %819 = vmatprep.mubr.bf16.mxu0 0
        %820 = vmatmul.mubr.bf16.gmra.mrb[0].mxu0 %v712
        %v821 = vpop.f32.mrb[0].mxu0
        %v822 = vadd.f32 0.0, %v821
        %v823 = vpop.f32.mrb[0].mxu0
        %v824 = vpop.f32.mrb[0].mxu0
        %v825 = vadd.f32 0.0, %v824
        %v826 = vpop.f32.mrb[0].mxu0
        %827 = vdwg.mxu0
        %v828 = vmul.f32 %v629, 0.25
        %v829 = vmul.f32 %v632, 0.25
        %v830 = vmul.f32 %v673, 0.25
        %v831 = vmul.f32 %v676, 0.25
        %v832 = vpack.c.bf16 %v829, %v828
        %v833 = vpack.c.bf16 %v831, %v830
        %v834 = vpack.c.bf16 %v752, %v749
        %v835 = vpack.c.bf16 %v825, %v822
        %v836 = vld [vmem:[%s7] sm:$0xf]
        %v837 = vld [vmem:[%s7 + $0x4] sm:$0xf]
        %v838 = vld [vmem:[%s9] sm:$0xf]
        %v839 = vld [vmem:[%s9 + $0x4] sm:$0xf]
        %vm840 = vcmask 130048
        %v842 = vsel %vm840, %v832, 0
        %v845 = vsel %vm840, %v833, 0
        %v848 = vsel %vm840, %v834, 0
        %850 = vmatprep.subr.bf16.mxu0 0
        %851 = vmatpush1.bf16.xpose.msra.mxu0 %v848
        %852 = vmatprep.subr.bf16.mxu0 0
        %853 = vmatpush1.bf16.xpose.msra.mxu0 0
        %854 = vmatprep.subr.bf16.mxu0 0
        %855 = vmatpush1.bf16.xpose.msra.mxu0 0
        %856 = vmatprep.subr.bf16.mxu0 0
        %857 = vmatpush1.bf16.xpose.msra.mxu0 0
        %858 = vmatprep.subr.bf16.mxu0 0
        %859 = vmatpush1.bf16.xpose.msra.mxu0 0
        %860 = vmatprep.subr.bf16.mxu0 0
        %861 = vmatpush1.bf16.xpose.msra.mxu0 0
        %862 = vmatprep.subr.bf16.mxu0 0
        %863 = vmatpush1.bf16.xpose.msra.mxu0 0
        %864 = vmatprep.subr.bf16.mxu0 0
        %865 = vmatpush1.bf16.xpose.msra.mxu0 0
        %866 = vmatprep.subr.bf16.mxu0 0
        %867 = vmatpush1.bf16.xpose.msra.mxu0 0
        %868 = vmatprep.subr.bf16.mxu0 0
        %869 = vmatpush1.bf16.xpose.msra.mxu0 0
        %870 = vmatprep.subr.bf16.mxu0 0
        %871 = vmatpush1.bf16.xpose.msra.mxu0 0
        %872 = vmatprep.subr.bf16.mxu0 0
        %873 = vmatpush1.bf16.xpose.msra.mxu0 0
        %874 = vmatprep.subr.bf16.mxu0 0
        %875 = vmatpush1.bf16.xpose.msra.mxu0 0
        %876 = vmatprep.subr.bf16.mxu0 0
        %877 = vmatpush1.bf16.xpose.msra.mxu0 0
        %878 = vmatprep.subr.bf16.mxu0 0
        %879 = vmatpush1.bf16.xpose.msra.mxu0 0
        %880 = vmatprep.subr.bf16.mxu0 0
        %881 = vmatpush1.bf16.xpose.msra.mxu0 0
        %882 = vmatprep.mubr.bf16.mxu0 0
        %883 = vmatmul.mubr.bf16.gmra.mrb[0].mxu0 %v842
        %v884 = vpop.f32.mrb[0].mxu0
        %v885 = vadd.f32 0.0, %v884
        %v886 = vpop.f32.mrb[0].mxu0
        %v887 = vpop.f32.mrb[0].mxu0
        %v888 = vadd.f32 0.0, %v887
        %v889 = vpop.f32.mrb[0].mxu0
        %890 = vmatprep.mubr.bf16.mxu0 0
        %891 = vmatmul.mubr.bf16.gmra.mrb[0].mxu0 %v845
        %v892 = vpop.f32.mrb[0].mxu0
        %v893 = vadd.f32 0.0, %v892
        %v894 = vpop.f32.mrb[0].mxu0
        %v895 = vpop.f32.mrb[0].mxu0
        %v896 = vadd.f32 0.0, %v895
        %v897 = vpop.f32.mrb[0].mxu0
        %898 = vdwg.mxu0
        %v899 = vsel %vm840, %v885, -inf
        %900 = vmax.xlane.f32.xlu0 %v899
        %v901 = vpop.xlane.xlu0 %900
        %v902 = vsel %vm840, %v888, -inf
        %903 = vmax.xlane.f32.xlu0 %v902
        %v904 = vpop.xlane.xlu0 %903
        %v905 = vsel %vm840, %v893, -inf
        %906 = vmax.xlane.f32.xlu0 %v905
        %v907 = vpop.xlane.xlu0 %906
        %v908 = vsel %vm840, %v896, -inf
        %909 = vmax.xlane.f32.xlu0 %v908
        %v910 = vpop.xlane.xlu0 %909
        %v911 = vsub.f32 %v885, %v901
        %v912 = vsub.f32 %v888, %v904
        %v913 = vsub.f32 %v893, %v907
        %v914 = vsub.f32 %v896, %v910
        %v915 = vmul.f32 %v911, 1.442695
        %v916 = vpow.pop %v915
        %v917 = vmul.f32 %v912, 1.442695
        %v918 = vpow.pop %v917
        %v919 = vmul.f32 %v913, 1.442695
        %v920 = vpow.pop %v919
        %v921 = vmul.f32 %v914, 1.442695
        %v922 = vpow.pop %v921
        %v923 = vsel %vm840, %v916, 0.0
        %924 = vadd.xlane.f32.xlu0 %v923
        %v925 = vpop.xlane.xlu0 %924
        %v926 = vsel %vm840, %v918, 0.0
        %927 = vadd.xlane.f32.xlu0 %v926
        %v928 = vpop.xlane.xlu0 %927
        %v929 = vsel %vm840, %v920, 0.0
        %930 = vadd.xlane.f32.xlu0 %v929
        %v931 = vpop.xlane.xlu0 %930
        %v932 = vsel %vm840, %v922, 0.0
        %933 = vadd.xlane.f32.xlu0 %v932
        %v934 = vpop.xlane.xlu0 %933
        %v935 = vrcp.pop %v925
        %v936 = vrcp.pop %v928
        %v937 = vrcp.pop %v931
        %v938 = vrcp.pop %v934
        %v939 = vmul.f32 %v916, %v935
        %v940 = vmul.f32 %v918, %v936
        %v941 = vmul.f32 %v920, %v937
        %v942 = vmul.f32 %v922, %v938
        %v943 = vpack.c.bf16 %v940, %v939
        %v944 = vpack.c.bf16 %v942, %v941
        %v946 = vsel %vm840, %v943, 0
        %v949 = vsel %vm840, %v944, 0
        %951 = vmatprep.subr.bf16.mxu0 0
        %952 = vmatpush1.bf16.msra.mxu0 %v835
        %953 = vmatprep.subr.bf16.mxu0 0
        %954 = vmatpush1.bf16.msra.mxu0 0
        %955 = vmatprep.subr.bf16.mxu0 0
        %956 = vmatpush1.bf16.msra.mxu0 0
        %957 = vmatprep.subr.bf16.mxu0 0
        %958 = vmatpush1.bf16.msra.mxu0 0
        %959 = vmatprep.subr.bf16.mxu0 0
        %960 = vmatpush1.bf16.msra.mxu0 0
        %961 = vmatprep.subr.bf16.mxu0 0
        %962 = vmatpush1.bf16.msra.mxu0 0
        %963 = vmatprep.subr.bf16.mxu0 0
        %964 = vmatpush1.bf16.msra.mxu0 0
        %965 = vmatprep.subr.bf16.mxu0 0
        %966 = vmatpush1.bf16.msra.mxu0 0
        %967 = vmatprep.subr.bf16.mxu0 0
        %968 = vmatpush1.bf16.msra.mxu0 0
        %969 = vmatprep.subr.bf16.mxu0 0
        %970 = vmatpush1.bf16.msra.mxu0 0
        %971 = vmatprep.subr.bf16.mxu0 0
        %972 = vmatpush1.bf16.msra.mxu0 0
        %973 = vmatprep.subr.bf16.mxu0 0
        %974 = vmatpush1.bf16.msra.mxu0 0
        %975 = vmatprep.subr.bf16.mxu0 0
        %976 = vmatpush1.bf16.msra.mxu0 0
        %977 = vmatprep.subr.bf16.mxu0 0
        %978 = vmatpush1.bf16.msra.mxu0 0
        %979 = vmatprep.subr.bf16.mxu0 0
        %980 = vmatpush1.bf16.msra.mxu0 0
        %981 = vmatprep.subr.bf16.mxu0 0
        %982 = vmatpush1.bf16.msra.mxu0 0
        %983 = vmatprep.mubr.bf16.mxu0 0
        %984 = vmatmul.mubr.bf16.gmra.mrb[0].mxu0 %v946
        %v985 = vpop.f32.mrb[0].mxu0
        %v986 = vadd.f32 0.0, %v985
        %v987 = vpop.f32.mrb[0].mxu0
        %v988 = vpop.f32.mrb[0].mxu0
        %v989 = vadd.f32 0.0, %v988
        %v990 = vpop.f32.mrb[0].mxu0
        %991 = vmatprep.mubr.bf16.mxu0 0
        %992 = vmatmul.mubr.bf16.gmra.mrb[0].mxu0 %v949
        %v993 = vpop.f32.mrb[0].mxu0
        %v994 = vadd.f32 0.0, %v993
        %v995 = vpop.f32.mrb[0].mxu0
        %v996 = vpop.f32.mrb[0].mxu0
        %v997 = vadd.f32 0.0, %v996
        %v998 = vpop.f32.mrb[0].mxu0
        %999 = vdwg.mxu0
        %v1000 = vpack.c.bf16 %v989, %v986
        %v1001 = vpack.c.bf16 %v997, %v994
        %v1004 = vunpack.c.l.b16 %v836
        %v1005 = vunpack.c.l.b16 %v837
        %v1006 = vpack.c.b16 %v1005, %v1004
        %v1009 = vsel %vm840, %v1000, 0
        %1011 = vmatprep.subr.bf16.mxu0 0
        %1012 = vmatpush1.bf16.msra.mxu0 %v1006
        %1013 = vmatprep.subr.bf16.mxu0 0
        %1014 = vmatpush1.bf16.msra.mxu0 0
        %1015 = vmatprep.subr.bf16.mxu0 0
        %1016 = vmatpush1.bf16.msra.mxu0 0
        %1017 = vmatprep.subr.bf16.mxu0 0
        %1018 = vmatpush1.bf16.msra.mxu0 0
        %1019 = vmatprep.subr.bf16.mxu0 0
        %1020 = vmatpush1.bf16.msra.mxu0 0
        %1021 = vmatprep.subr.bf16.mxu0 0
        %1022 = vmatpush1.bf16.msra.mxu0 0
        %1023 = vmatprep.subr.bf16.mxu0 0
        %1024 = vmatpush1.bf16.msra.mxu0 0
        %1025 = vmatprep.subr.bf16.mxu0 0
        %1026 = vmatpush1.bf16.msra.mxu0 0
        %1027 = vmatprep.subr.bf16.mxu0 0
        %1028 = vmatpush1.bf16.msra.mxu0 0
        %1029 = vmatprep.subr.bf16.mxu0 0
        %1030 = vmatpush1.bf16.msra.mxu0 0
        %1031 = vmatprep.subr.bf16.mxu0 0
        %1032 = vmatpush1.bf16.msra.mxu0 0
        %1033 = vmatprep.subr.bf16.mxu0 0
        %1034 = vmatpush1.bf16.msra.mxu0 0
        %1035 = vmatprep.subr.bf16.mxu0 0
        %1036 = vmatpush1.bf16.msra.mxu0 0
        %1037 = vmatprep.subr.bf16.mxu0 0
        %1038 = vmatpush1.bf16.msra.mxu0 0
        %1039 = vmatprep.subr.bf16.mxu0 0
        %1040 = vmatpush1.bf16.msra.mxu0 0
        %1041 = vmatprep.subr.bf16.mxu0 0
        %1042 = vmatpush1.bf16.msra.mxu0 0
        %1043 = vmatprep.mubr.bf16.mxu0 0
        %1044 = vmatmul.mubr.bf16.gmra.mrb[0].mxu0 %v1009
        %v1045 = vpop.f32.mrb[0].mxu0
        %v1046 = vadd.f32 0.0, %v1045
        %v1047 = vpop.f32.mrb[0].mxu0
        %v1048 = vpop.f32.mrb[0].mxu0
        %v1049 = vadd.f32 0.0, %v1048
        %v1050 = vpop.f32.mrb[0].mxu0
        %1051 = vdwg.mxu0
        %v1054 = vunpack.c.l.b16 %v838
        %v1055 = vunpack.c.l.b16 %v839
        %v1056 = vpack.c.b16 %v1055, %v1054
        %v1059 = vsel %vm840, %v1001, 0
        %1061 = vmatprep.subr.bf16.mxu0 0
        %1062 = vmatpush1.bf16.msra.mxu0 %v1056
        %1063 = vmatprep.subr.bf16.mxu0 0
        %1064 = vmatpush1.bf16.msra.mxu0 0
        %1065 = vmatprep.subr.bf16.mxu0 0
        %1066 = vmatpush1.bf16.msra.mxu0 0
        %1067 = vmatprep.subr.bf16.mxu0 0
        %1068 = vmatpush1.bf16.msra.mxu0 0
        %1069 = vmatprep.subr.bf16.mxu0 0
        %1070 = vmatpush1.bf16.msra.mxu0 0
        %1071 = vmatprep.subr.bf16.mxu0 0
        %1072 = vmatpush1.bf16.msra.mxu0 0
        %1073 = vmatprep.subr.bf16.mxu0 0
        %1074 = vmatpush1.bf16.msra.mxu0 0
        %1075 = vmatprep.subr.bf16.mxu0 0
        %1076 = vmatpush1.bf16.msra.mxu0 0
        %1077 = vmatprep.subr.bf16.mxu0 0
        %1078 = vmatpush1.bf16.msra.mxu0 0
        %1079 = vmatprep.subr.bf16.mxu0 0
        %1080 = vmatpush1.bf16.msra.mxu0 0
        %1081 = vmatprep.subr.bf16.mxu0 0
        %1082 = vmatpush1.bf16.msra.mxu0 0
        %1083 = vmatprep.subr.bf16.mxu0 0
        %1084 = vmatpush1.bf16.msra.mxu0 0
        %1085 = vmatprep.subr.bf16.mxu0 0
        %1086 = vmatpush1.bf16.msra.mxu0 0
        %1087 = vmatprep.subr.bf16.mxu0 0
        %1088 = vmatpush1.bf16.msra.mxu0 0
        %1089 = vmatprep.subr.bf16.mxu0 0
        %1090 = vmatpush1.bf16.msra.mxu0 0
        %1091 = vmatprep.subr.bf16.mxu0 0
        %1092 = vmatpush1.bf16.msra.mxu0 0
        %1093 = vmatprep.mubr.bf16.mxu0 0
        %1094 = vmatmul.mubr.bf16.gmra.mrb[0].mxu0 %v1059
        %v1095 = vpop.f32.mrb[0].mxu0
        %v1096 = vadd.f32 0.0, %v1095
        %v1097 = vpop.f32.mrb[0].mxu0
        %v1098 = vpop.f32.mrb[0].mxu0
        %v1099 = vadd.f32 0.0, %v1098
        %v1100 = vpop.f32.mrb[0].mxu0
        %1101 = vdwg.mxu0
        %1104 = vrot.lane.b32.xlu0 %v832, 112
        %v1105 = vpop.permute.xlu0 %1104
        %1106 = vrot.lane.b32.xlu0 %v833, 112
        %v1107 = vpop.permute.xlu0 %1106
        %1109 = vrot.lane.b32.xlu0 %v834, 112
        %v1110 = vpop.permute.xlu0 %1109
        %v1112 = vsel %vm840, %v1105, 0
        %v1115 = vsel %vm840, %v1107, 0
        %v1118 = vsel %vm840, %v1110, 0
        %1120 = vmatprep.subr.bf16.mxu0 0
        %1121 = vmatpush1.bf16.xpose.msra.mxu0 %v1118
        %1122 = vmatprep.subr.bf16.mxu0 0
        %1123 = vmatpush1.bf16.xpose.msra.mxu0 0
        %1124 = vmatprep.subr.bf16.mxu0 0
        %1125 = vmatpush1.bf16.xpose.msra.mxu0 0
        %1126 = vmatprep.subr.bf16.mxu0 0
        %1127 = vmatpush1.bf16.xpose.msra.mxu0 0
        %1128 = vmatprep.subr.bf16.mxu0 0
        %1129 = vmatpush1.bf16.xpose.msra.mxu0 0
        %1130 = vmatprep.subr.bf16.mxu0 0
        %1131 = vmatpush1.bf16.xpose.msra.mxu0 0
        %1132 = vmatprep.subr.bf16.mxu0 0
        %1133 = vmatpush1.bf16.xpose.msra.mxu0 0
        %1134 = vmatprep.subr.bf16.mxu0 0
        %1135 = vmatpush1.bf16.xpose.msra.mxu0 0
        %1136 = vmatprep.subr.bf16.mxu0 0
        %1137 = vmatpush1.bf16.xpose.msra.mxu0 0
        %1138 = vmatprep.subr.bf16.mxu0 0
        %1139 = vmatpush1.bf16.xpose.msra.mxu0 0
        %1140 = vmatprep.subr.bf16.mxu0 0
        %1141 = vmatpush1.bf16.xpose.msra.mxu0 0
        %1142 = vmatprep.subr.bf16.mxu0 0
        %1143 = vmatpush1.bf16.xpose.msra.mxu0 0
        %1144 = vmatprep.subr.bf16.mxu0 0
        %1145 = vmatpush1.bf16.xpose.msra.mxu0 0
        %1146 = vmatprep.subr.bf16.mxu0 0
        %1147 = vmatpush1.bf16.xpose.msra.mxu0 0
        %1148 = vmatprep.subr.bf16.mxu0 0
        %1149 = vmatpush1.bf16.xpose.msra.mxu0 0
        %1150 = vmatprep.subr.bf16.mxu0 0
        %1151 = vmatpush1.bf16.xpose.msra.mxu0 0
        %1152 = vmatprep.mubr.bf16.mxu0 0
        %1153 = vmatmul.mubr.bf16.gmra.mrb[0].mxu0 %v1112
        %v1154 = vpop.f32.mrb[0].mxu0
        %v1155 = vadd.f32 0.0, %v1154
        %v1156 = vpop.f32.mrb[0].mxu0
        %v1157 = vpop.f32.mrb[0].mxu0
        %v1158 = vadd.f32 0.0, %v1157
        %v1159 = vpop.f32.mrb[0].mxu0
        %1160 = vmatprep.mubr.bf16.mxu0 0
        %1161 = vmatmul.mubr.bf16.gmra.mrb[0].mxu0 %v1115
        %v1162 = vpop.f32.mrb[0].mxu0
        %v1163 = vadd.f32 0.0, %v1162
        %v1164 = vpop.f32.mrb[0].mxu0
        %v1165 = vpop.f32.mrb[0].mxu0
        %v1166 = vadd.f32 0.0, %v1165
        %v1167 = vpop.f32.mrb[0].mxu0
        %1168 = vdwg.mxu0
        %v1169 = vsel %vm840, %v1155, -inf
        %1170 = vmax.xlane.f32.xlu0 %v1169
        %v1171 = vpop.xlane.xlu0 %1170
        %v1172 = vsel %vm840, %v1158, -inf
        %1173 = vmax.xlane.f32.xlu0 %v1172
        %v1174 = vpop.xlane.xlu0 %1173
        %v1175 = vsel %vm840, %v1163, -inf
        %1176 = vmax.xlane.f32.xlu0 %v1175
        %v1177 = vpop.xlane.xlu0 %1176
        %v1178 = vsel %vm840, %v1166, -inf
        %1179 = vmax.xlane.f32.xlu0 %v1178
        %v1180 = vpop.xlane.xlu0 %1179
        %v1181 = vsub.f32 %v1155, %v1171
        %v1182 = vsub.f32 %v1158, %v1174
        %v1183 = vsub.f32 %v1163, %v1177
        %v1184 = vsub.f32 %v1166, %v1180
        %v1185 = vmul.f32 %v1181, 1.442695
        %v1186 = vpow.pop %v1185
        %v1187 = vmul.f32 %v1182, 1.442695
        %v1188 = vpow.pop %v1187
        %v1189 = vmul.f32 %v1183, 1.442695
        %v1190 = vpow.pop %v1189
        %v1191 = vmul.f32 %v1184, 1.442695
        %v1192 = vpow.pop %v1191
        %v1193 = vsel %vm840, %v1186, 0.0
        %1194 = vadd.xlane.f32.xlu0 %v1193
        %v1195 = vpop.xlane.xlu0 %1194
        %v1196 = vsel %vm840, %v1188, 0.0
        %1197 = vadd.xlane.f32.xlu0 %v1196
        %v1198 = vpop.xlane.xlu0 %1197
        %v1199 = vsel %vm840, %v1190, 0.0
        %1200 = vadd.xlane.f32.xlu0 %v1199
        %v1201 = vpop.xlane.xlu0 %1200
        %v1202 = vsel %vm840, %v1192, 0.0
        %1203 = vadd.xlane.f32.xlu0 %v1202
        %v1204 = vpop.xlane.xlu0 %1203
        %v1205 = vrcp.pop %v1195
        %v1206 = vrcp.pop %v1198
        %v1207 = vrcp.pop %v1201
        %v1208 = vrcp.pop %v1204
        %v1209 = vmul.f32 %v1186, %v1205
        %v1210 = vmul.f32 %v1188, %v1206
        %v1211 = vmul.f32 %v1190, %v1207
        %v1212 = vmul.f32 %v1192, %v1208
        %v1213 = vpack.c.bf16 %v1210, %v1209
        %v1214 = vpack.c.bf16 %v1212, %v1211
        %1216 = vrot.lane.b32.xlu0 %v835, 112
        %v1217 = vpop.permute.xlu0 %1216
        %v1220 = vsel %vm840, %v1213, 0
        %v1223 = vsel %vm840, %v1214, 0
        %1225 = vmatprep.subr.bf16.mxu0 0
        %1226 = vmatpush1.bf16.msra.mxu0 %v1217
        %1227 = vmatprep.subr.bf16.mxu0 0
        %1228 = vmatpush1.bf16.msra.mxu0 0
        %1229 = vmatprep.subr.bf16.mxu0 0
        %1230 = vmatpush1.bf16.msra.mxu0 0
        %1231 = vmatprep.subr.bf16.mxu0 0
        %1232 = vmatpush1.bf16.msra.mxu0 0
        %1233 = vmatprep.subr.bf16.mxu0 0
        %1234 = vmatpush1.bf16.msra.mxu0 0
        %1235 = vmatprep.subr.bf16.mxu0 0
        %1236 = vmatpush1.bf16.msra.mxu0 0
        %1237 = vmatprep.subr.bf16.mxu0 0
        %1238 = vmatpush1.bf16.msra.mxu0 0
        %1239 = vmatprep.subr.bf16.mxu0 0
        %1240 = vmatpush1.bf16.msra.mxu0 0
        %1241 = vmatprep.subr.bf16.mxu0 0
        %1242 = vmatpush1.bf16.msra.mxu0 0
        %1243 = vmatprep.subr.bf16.mxu0 0
        %1244 = vmatpush1.bf16.msra.mxu0 0
        %1245 = vmatprep.subr.bf16.mxu0 0
        %1246 = vmatpush1.bf16.msra.mxu0 0
        %1247 = vmatprep.subr.bf16.mxu0 0
        %1248 = vmatpush1.bf16.msra.mxu0 0
        %1249 = vmatprep.subr.bf16.mxu0 0
        %1250 = vmatpush1.bf16.msra.mxu0 0
        %1251 = vmatprep.subr.bf16.mxu0 0
        %1252 = vmatpush1.bf16.msra.mxu0 0
        %1253 = vmatprep.subr.bf16.mxu0 0
        %1254 = vmatpush1.bf16.msra.mxu0 0
        %1255 = vmatprep.subr.bf16.mxu0 0
        %1256 = vmatpush1.bf16.msra.mxu0 0
        %1257 = vmatprep.mubr.bf16.mxu0 0
        %1258 = vmatmul.mubr.bf16.gmra.mrb[0].mxu0 %v1220
        %v1259 = vpop.f32.mrb[0].mxu0
        %v1260 = vadd.f32 0.0, %v1259
        %v1261 = vpop.f32.mrb[0].mxu0
        %v1262 = vpop.f32.mrb[0].mxu0
        %v1263 = vadd.f32 0.0, %v1262
        %v1264 = vpop.f32.mrb[0].mxu0
        %1265 = vmatprep.mubr.bf16.mxu0 0
        %1266 = vmatmul.mubr.bf16.gmra.mrb[0].mxu0 %v1223
        %v1267 = vpop.f32.mrb[0].mxu0
        %v1268 = vadd.f32 0.0, %v1267
        %v1269 = vpop.f32.mrb[0].mxu0
        %v1270 = vpop.f32.mrb[0].mxu0
        %v1271 = vadd.f32 0.0, %v1270
        %v1272 = vpop.f32.mrb[0].mxu0
        %1273 = vdwg.mxu0
        %v1274 = vpack.c.bf16 %v1263, %v1260
        %v1275 = vpack.c.bf16 %v1271, %v1268
        %v1277 = vsel %vm840, %v1274, 0
        %1279 = vmatprep.subr.bf16.mxu0 0
        %1280 = vmatpush1.bf16.msra.mxu0 %v1006
        %1281 = vmatprep.subr.bf16.mxu0 0
        %1282 = vmatpush1.bf16.msra.mxu0 0
        %1283 = vmatprep.subr.bf16.mxu0 0
        %1284 = vmatpush1.bf16.msra.mxu0 0
        %1285 = vmatprep.subr.bf16.mxu0 0
        %1286 = vmatpush1.bf16.msra.mxu0 0
        %1287 = vmatprep.subr.bf16.mxu0 0
        %1288 = vmatpush1.bf16.msra.mxu0 0
        %1289 = vmatprep.subr.bf16.mxu0 0
        %1290 = vmatpush1.bf16.msra.mxu0 0
        %1291 = vmatprep.subr.bf16.mxu0 0
        %1292 = vmatpush1.bf16.msra.mxu0 0
        %1293 = vmatprep.subr.bf16.mxu0 0
        %1294 = vmatpush1.bf16.msra.mxu0 0
        %1295 = vmatprep.subr.bf16.mxu0 0
        %1296 = vmatpush1.bf16.msra.mxu0 0
        %1297 = vmatprep.subr.bf16.mxu0 0
        %1298 = vmatpush1.bf16.msra.mxu0 0
        %1299 = vmatprep.subr.bf16.mxu0 0
        %1300 = vmatpush1.bf16.msra.mxu0 0
        %1301 = vmatprep.subr.bf16.mxu0 0
        %1302 = vmatpush1.bf16.msra.mxu0 0
        %1303 = vmatprep.subr.bf16.mxu0 0
        %1304 = vmatpush1.bf16.msra.mxu0 0
        %1305 = vmatprep.subr.bf16.mxu0 0
        %1306 = vmatpush1.bf16.msra.mxu0 0
        %1307 = vmatprep.subr.bf16.mxu0 0
        %1308 = vmatpush1.bf16.msra.mxu0 0
        %1309 = vmatprep.subr.bf16.mxu0 0
        %1310 = vmatpush1.bf16.msra.mxu0 0
        %1311 = vmatprep.mubr.bf16.mxu0 0
        %1312 = vmatmul.mubr.bf16.gmra.mrb[0].mxu0 %v1277
        %v1313 = vpop.f32.mrb[0].mxu0
        %v1314 = vadd.f32 0.0, %v1313
        %v1315 = vpop.f32.mrb[0].mxu0
        %v1316 = vpop.f32.mrb[0].mxu0
        %v1317 = vadd.f32 0.0, %v1316
        %v1318 = vpop.f32.mrb[0].mxu0
        %1319 = vdwg.mxu0
        %v1321 = vsel %vm840, %v1275, 0
        %1323 = vmatprep.subr.bf16.mxu0 0
        %1324 = vmatpush1.bf16.msra.mxu0 %v1056
        %1325 = vmatprep.subr.bf16.mxu0 0
        %1326 = vmatpush1.bf16.msra.mxu0 0
        %1327 = vmatprep.subr.bf16.mxu0 0
        %1328 = vmatpush1.bf16.msra.mxu0 0
        %1329 = vmatprep.subr.bf16.mxu0 0
        %1330 = vmatpush1.bf16.msra.mxu0 0
        %1331 = vmatprep.subr.bf16.mxu0 0
        %1332 = vmatpush1.bf16.msra.mxu0 0
        %1333 = vmatprep.subr.bf16.mxu0 0
        %1334 = vmatpush1.bf16.msra.mxu0 0
        %1335 = vmatprep.subr.bf16.mxu0 0
        %1336 = vmatpush1.bf16.msra.mxu0 0
        %1337 = vmatprep.subr.bf16.mxu0 0
        %1338 = vmatpush1.bf16.msra.mxu0 0
        %1339 = vmatprep.subr.bf16.mxu0 0
        %1340 = vmatpush1.bf16.msra.mxu0 0
        %1341 = vmatprep.subr.bf16.mxu0 0
        %1342 = vmatpush1.bf16.msra.mxu0 0
        %1343 = vmatprep.subr.bf16.mxu0 0
        %1344 = vmatpush1.bf16.msra.mxu0 0
        %1345 = vmatprep.subr.bf16.mxu0 0
        %1346 = vmatpush1.bf16.msra.mxu0 0
        %1347 = vmatprep.subr.bf16.mxu0 0
        %1348 = vmatpush1.bf16.msra.mxu0 0
        %1349 = vmatprep.subr.bf16.mxu0 0
        %1350 = vmatpush1.bf16.msra.mxu0 0
        %1351 = vmatprep.subr.bf16.mxu0 0
        %1352 = vmatpush1.bf16.msra.mxu0 0
        %1353 = vmatprep.subr.bf16.mxu0 0
        %1354 = vmatpush1.bf16.msra.mxu0 0
        %1355 = vmatprep.mubr.bf16.mxu0 0
        %1356 = vmatmul.mubr.bf16.gmra.mrb[0].mxu0 %v1321
        %v1357 = vpop.f32.mrb[0].mxu0
        %v1358 = vadd.f32 0.0, %v1357
        %v1359 = vpop.f32.mrb[0].mxu0
        %v1360 = vpop.f32.mrb[0].mxu0
        %v1361 = vadd.f32 0.0, %v1360
        %v1362 = vpop.f32.mrb[0].mxu0
        %1363 = vdwg.mxu0
        %1364 = vrot.lane.b32.xlu0 %v832, 96
        %v1365 = vpop.permute.xlu0 %1364
        %1366 = vrot.lane.b32.xlu0 %v833, 96
        %v1367 = vpop.permute.xlu0 %1366
        %1368 = vrot.lane.b32.xlu0 %v834, 96
        %v1369 = vpop.permute.xlu0 %1368
        %v1371 = vsel %vm840, %v1365, 0
        %v1374 = vsel %vm840, %v1367, 0
        %v1377 = vsel %vm840, %v1369, 0
        %1379 = vmatprep.subr.bf16.mxu0 0
        %1380 = vmatpush1.bf16.xpose.msra.mxu0 %v1377
        %1381 = vmatprep.subr.bf16.mxu0 0
        %1382 = vmatpush1.bf16.xpose.msra.mxu0 0
        %1383 = vmatprep.subr.bf16.mxu0 0
        %1384 = vmatpush1.bf16.xpose.msra.mxu0 0
        %1385 = vmatprep.subr.bf16.mxu0 0
        %1386 = vmatpush1.bf16.xpose.msra.mxu0 0
        %1387 = vmatprep.subr.bf16.mxu0 0
        %1388 = vmatpush1.bf16.xpose.msra.mxu0 0
        %1389 = vmatprep.subr.bf16.mxu0 0
        %1390 = vmatpush1.bf16.xpose.msra.mxu0 0
        %1391 = vmatprep.subr.bf16.mxu0 0
        %1392 = vmatpush1.bf16.xpose.msra.mxu0 0
        %1393 = vmatprep.subr.bf16.mxu0 0
        %1394 = vmatpush1.bf16.xpose.msra.mxu0 0
        %1395 = vmatprep.subr.bf16.mxu0 0
        %1396 = vmatpush1.bf16.xpose.msra.mxu0 0
        %1397 = vmatprep.subr.bf16.mxu0 0
        %1398 = vmatpush1.bf16.xpose.msra.mxu0 0
        %1399 = vmatprep.subr.bf16.mxu0 0
        %1400 = vmatpush1.bf16.xpose.msra.mxu0 0
        %1401 = vmatprep.subr.bf16.mxu0 0
        %1402 = vmatpush1.bf16.xpose.msra.mxu0 0
        %1403 = vmatprep.subr.bf16.mxu0 0
        %1404 = vmatpush1.bf16.xpose.msra.mxu0 0
        %1405 = vmatprep.subr.bf16.mxu0 0
        %1406 = vmatpush1.bf16.xpose.msra.mxu0 0
        %1407 = vmatprep.subr.bf16.mxu0 0
        %1408 = vmatpush1.bf16.xpose.msra.mxu0 0
        %1409 = vmatprep.subr.bf16.mxu0 0
        %1410 = vmatpush1.bf16.xpose.msra.mxu0 0
        %1411 = vmatprep.mubr.bf16.mxu0 0
        %1412 = vmatmul.mubr.bf16.gmra.mrb[0].mxu0 %v1371
        %v1413 = vpop.f32.mrb[0].mxu0
        %v1414 = vadd.f32 0.0, %v1413
        %v1415 = vpop.f32.mrb[0].mxu0
        %v1416 = vpop.f32.mrb[0].mxu0
        %v1417 = vadd.f32 0.0, %v1416
        %v1418 = vpop.f32.mrb[0].mxu0
        %1419 = vmatprep.mubr.bf16.mxu0 0
        %1420 = vmatmul.mubr.bf16.gmra.mrb[0].mxu0 %v1374
        %v1421 = vpop.f32.mrb[0].mxu0
        %v1422 = vadd.f32 0.0, %v1421
        %v1423 = vpop.f32.mrb[0].mxu0
        %v1424 = vpop.f32.mrb[0].mxu0
        %v1425 = vadd.f32 0.0, %v1424
        %v1426 = vpop.f32.mrb[0].mxu0
        %1427 = vdwg.mxu0
        %v1428 = vsel %vm840, %v1414, -inf
        %1429 = vmax.xlane.f32.xlu0 %v1428
        %v1430 = vpop.xlane.xlu0 %1429
        %v1431 = vsel %vm840, %v1417, -inf
        %1432 = vmax.xlane.f32.xlu0 %v1431
        %v1433 = vpop.xlane.xlu0 %1432
        %v1434 = vsel %vm840, %v1422, -inf
        %1435 = vmax.xlane.f32.xlu0 %v1434
        %v1436 = vpop.xlane.xlu0 %1435
        %v1437 = vsel %vm840, %v1425, -inf
        %1438 = vmax.xlane.f32.xlu0 %v1437
        %v1439 = vpop.xlane.xlu0 %1438
        %v1440 = vsub.f32 %v1414, %v1430
        %v1441 = vsub.f32 %v1417, %v1433
        %v1442 = vsub.f32 %v1422, %v1436
        %v1443 = vsub.f32 %v1425, %v1439
        %v1444 = vmul.f32 %v1440, 1.442695
        %v1445 = vpow.pop %v1444
        %v1446 = vmul.f32 %v1441, 1.442695
        %v1447 = vpow.pop %v1446
        %v1448 = vmul.f32 %v1442, 1.442695
        %v1449 = vpow.pop %v1448
        %v1450 = vmul.f32 %v1443, 1.442695
        %v1451 = vpow.pop %v1450
        %v1452 = vsel %vm840, %v1445, 0.0
        %1453 = vadd.xlane.f32.xlu0 %v1452
        %v1454 = vpop.xlane.xlu0 %1453
        %v1455 = vsel %vm840, %v1447, 0.0
        %1456 = vadd.xlane.f32.xlu0 %v1455
        %v1457 = vpop.xlane.xlu0 %1456
        %v1458 = vsel %vm840, %v1449, 0.0
        %1459 = vadd.xlane.f32.xlu0 %v1458
        %v1460 = vpop.xlane.xlu0 %1459
        %v1461 = vsel %vm840, %v1451, 0.0
        %1462 = vadd.xlane.f32.xlu0 %v1461
        %v1463 = vpop.xlane.xlu0 %1462
        %v1464 = vrcp.pop %v1454
        %v1465 = vrcp.pop %v1457
        %v1466 = vrcp.pop %v1460
        %v1467 = vrcp.pop %v1463
        %v1468 = vmul.f32 %v1445, %v1464
        %v1469 = vmul.f32 %v1447, %v1465
        %v1470 = vmul.f32 %v1449, %v1466
        %v1471 = vmul.f32 %v1451, %v1467
        %v1472 = vpack.c.bf16 %v1469, %v1468
        %v1473 = vpack.c.bf16 %v1471, %v1470
        %1474 = vrot.lane.b32.xlu0 %v835, 96
        %v1475 = vpop.permute.xlu0 %1474
        %v1478 = vsel %vm840, %v1472, 0
        %v1481 = vsel %vm840, %v1473, 0
        %1483 = vmatprep.subr.bf16.mxu0 0
        %1484 = vmatpush1.bf16.msra.mxu0 %v1475
        %1485 = vmatprep.subr.bf16.mxu0 0
        %1486 = vmatpush1.bf16.msra.mxu0 0
        %1487 = vmatprep.subr.bf16.mxu0 0
        %1488 = vmatpush1.bf16.msra.mxu0 0
        %1489 = vmatprep.subr.bf16.mxu0 0
        %1490 = vmatpush1.bf16.msra.mxu0 0
        %1491 = vmatprep.subr.bf16.mxu0 0
        %1492 = vmatpush1.bf16.msra.mxu0 0
        %1493 = vmatprep.subr.bf16.mxu0 0
        %1494 = vmatpush1.bf16.msra.mxu0 0
        %1495 = vmatprep.subr.bf16.mxu0 0
        %1496 = vmatpush1.bf16.msra.mxu0 0
        %1497 = vmatprep.subr.bf16.mxu0 0
        %1498 = vmatpush1.bf16.msra.mxu0 0
        %1499 = vmatprep.subr.bf16.mxu0 0
        %1500 = vmatpush1.bf16.msra.mxu0 0
        %1501 = vmatprep.subr.bf16.mxu0 0
        %1502 = vmatpush1.bf16.msra.mxu0 0
        %1503 = vmatprep.subr.bf16.mxu0 0
        %1504 = vmatpush1.bf16.msra.mxu0 0
        %1505 = vmatprep.subr.bf16.mxu0 0
        %1506 = vmatpush1.bf16.msra.mxu0 0
        %1507 = vmatprep.subr.bf16.mxu0 0
        %1508 = vmatpush1.bf16.msra.mxu0 0
        %1509 = vmatprep.subr.bf16.mxu0 0
        %1510 = vmatpush1.bf16.msra.mxu0 0
        %1511 = vmatprep.subr.bf16.mxu0 0
        %1512 = vmatpush1.bf16.msra.mxu0 0
        %1513 = vmatprep.subr.bf16.mxu0 0
        %1514 = vmatpush1.bf16.msra.mxu0 0
        %1515 = vmatprep.mubr.bf16.mxu0 0
        %1516 = vmatmul.mubr.bf16.gmra.mrb[0].mxu0 %v1478
        %v1517 = vpop.f32.mrb[0].mxu0
        %v1518 = vadd.f32 0.0, %v1517
        %v1519 = vpop.f32.mrb[0].mxu0
        %v1520 = vpop.f32.mrb[0].mxu0
        %v1521 = vadd.f32 0.0, %v1520
        %v1522 = vpop.f32.mrb[0].mxu0
        %1523 = vmatprep.mubr.bf16.mxu0 0
        %1524 = vmatmul.mubr.bf16.gmra.mrb[0].mxu0 %v1481
        %v1525 = vpop.f32.mrb[0].mxu0
        %v1526 = vadd.f32 0.0, %v1525
        %v1527 = vpop.f32.mrb[0].mxu0
        %v1528 = vpop.f32.mrb[0].mxu0
        %v1529 = vadd.f32 0.0, %v1528
        %v1530 = vpop.f32.mrb[0].mxu0
        %1531 = vdwg.mxu0
        %v1532 = vpack.c.bf16 %v1521, %v1518
        %v1533 = vpack.c.bf16 %v1529, %v1526
        %v1535 = vsel %vm840, %v1532, 0
        %1537 = vmatprep.subr.bf16.mxu0 0
        %1538 = vmatpush1.bf16.msra.mxu0 %v1006
        %1539 = vmatprep.subr.bf16.mxu0 0
        %1540 = vmatpush1.bf16.msra.mxu0 0
        %1541 = vmatprep.subr.bf16.mxu0 0
        %1542 = vmatpush1.bf16.msra.mxu0 0
        %1543 = vmatprep.subr.bf16.mxu0 0
        %1544 = vmatpush1.bf16.msra.mxu0 0
        %1545 = vmatprep.subr.bf16.mxu0 0
        %1546 = vmatpush1.bf16.msra.mxu0 0
        %1547 = vmatprep.subr.bf16.mxu0 0
        %1548 = vmatpush1.bf16.msra.mxu0 0
        %1549 = vmatprep.subr.bf16.mxu0 0
        %1550 = vmatpush1.bf16.msra.mxu0 0
        %1551 = vmatprep.subr.bf16.mxu0 0
        %1552 = vmatpush1.bf16.msra.mxu0 0
        %1553 = vmatprep.subr.bf16.mxu0 0
        %1554 = vmatpush1.bf16.msra.mxu0 0
        %1555 = vmatprep.subr.bf16.mxu0 0
        %1556 = vmatpush1.bf16.msra.mxu0 0
        %1557 = vmatprep.subr.bf16.mxu0 0
        %1558 = vmatpush1.bf16.msra.mxu0 0
        %1559 = vmatprep.subr.bf16.mxu0 0
        %1560 = vmatpush1.bf16.msra.mxu0 0
        %1561 = vmatprep.subr.bf16.mxu0 0
        %1562 = vmatpush1.bf16.msra.mxu0 0
        %1563 = vmatprep.subr.bf16.mxu0 0
        %1564 = vmatpush1.bf16.msra.mxu0 0
        %1565 = vmatprep.subr.bf16.mxu0 0
        %1566 = vmatpush1.bf16.msra.mxu0 0
        %1567 = vmatprep.subr.bf16.mxu0 0
        %1568 = vmatpush1.bf16.msra.mxu0 0
        %1569 = vmatprep.mubr.bf16.mxu0 0
        %1570 = vmatmul.mubr.bf16.gmra.mrb[0].mxu0 %v1535
        %v1571 = vpop.f32.mrb[0].mxu0
        %v1572 = vadd.f32 0.0, %v1571
        %v1573 = vpop.f32.mrb[0].mxu0
        %v1574 = vpop.f32.mrb[0].mxu0
        %v1575 = vadd.f32 0.0, %v1574
        %v1576 = vpop.f32.mrb[0].mxu0
        %1577 = vdwg.mxu0
        %v1579 = vsel %vm840, %v1533, 0
        %1581 = vmatprep.subr.bf16.mxu0 0
        %1582 = vmatpush1.bf16.msra.mxu0 %v1056
        %1583 = vmatprep.subr.bf16.mxu0 0
        %1584 = vmatpush1.bf16.msra.mxu0 0
        %1585 = vmatprep.subr.bf16.mxu0 0
        %1586 = vmatpush1.bf16.msra.mxu0 0
        %1587 = vmatprep.subr.bf16.mxu0 0
        %1588 = vmatpush1.bf16.msra.mxu0 0
        %1589 = vmatprep.subr.bf16.mxu0 0
        %1590 = vmatpush1.bf16.msra.mxu0 0
        %1591 = vmatprep.subr.bf16.mxu0 0
        %1592 = vmatpush1.bf16.msra.mxu0 0
        %1593 = vmatprep.subr.bf16.mxu0 0
        %1594 = vmatpush1.bf16.msra.mxu0 0
        %1595 = vmatprep.subr.bf16.mxu0 0
        %1596 = vmatpush1.bf16.msra.mxu0 0
        %1597 = vmatprep.subr.bf16.mxu0 0
        %1598 = vmatpush1.bf16.msra.mxu0 0
        %1599 = vmatprep.subr.bf16.mxu0 0
        %1600 = vmatpush1.bf16.msra.mxu0 0
        %1601 = vmatprep.subr.bf16.mxu0 0
        %1602 = vmatpush1.bf16.msra.mxu0 0
        %1603 = vmatprep.subr.bf16.mxu0 0
        %1604 = vmatpush1.bf16.msra.mxu0 0
        %1605 = vmatprep.subr.bf16.mxu0 0
        %1606 = vmatpush1.bf16.msra.mxu0 0
        %1607 = vmatprep.subr.bf16.mxu0 0
        %1608 = vmatpush1.bf16.msra.mxu0 0
        %1609 = vmatprep.subr.bf16.mxu0 0
        %1610 = vmatpush1.bf16.msra.mxu0 0
        %1611 = vmatprep.subr.bf16.mxu0 0
        %1612 = vmatpush1.bf16.msra.mxu0 0
        %1613 = vmatprep.mubr.bf16.mxu0 0
        %1614 = vmatmul.mubr.bf16.gmra.mrb[0].mxu0 %v1579
        %v1615 = vpop.f32.mrb[0].mxu0
        %v1616 = vadd.f32 0.0, %v1615
        %v1617 = vpop.f32.mrb[0].mxu0
        %v1618 = vpop.f32.mrb[0].mxu0
        %v1619 = vadd.f32 0.0, %v1618
        %v1620 = vpop.f32.mrb[0].mxu0
        %1621 = vdwg.mxu0
        %1622 = vrot.lane.b32.xlu0 %v832, 80
        %v1623 = vpop.permute.xlu0 %1622
        %1624 = vrot.lane.b32.xlu0 %v833, 80
        %v1625 = vpop.permute.xlu0 %1624
        %1626 = vrot.lane.b32.xlu0 %v834, 80
        %v1627 = vpop.permute.xlu0 %1626
        %v1629 = vsel %vm840, %v1623, 0
        %v1632 = vsel %vm840, %v1625, 0
        %v1635 = vsel %vm840, %v1627, 0
        %1637 = vmatprep.subr.bf16.mxu0 0
        %1638 = vmatpush1.bf16.xpose.msra.mxu0 %v1635
        %1639 = vmatprep.subr.bf16.mxu0 0
        %1640 = vmatpush1.bf16.xpose.msra.mxu0 0
        %1641 = vmatprep.subr.bf16.mxu0 0
        %1642 = vmatpush1.bf16.xpose.msra.mxu0 0
        %1643 = vmatprep.subr.bf16.mxu0 0
        %1644 = vmatpush1.bf16.xpose.msra.mxu0 0
        %1645 = vmatprep.subr.bf16.mxu0 0
        %1646 = vmatpush1.bf16.xpose.msra.mxu0 0
        %1647 = vmatprep.subr.bf16.mxu0 0
        %1648 = vmatpush1.bf16.xpose.msra.mxu0 0
        %1649 = vmatprep.subr.bf16.mxu0 0
        %1650 = vmatpush1.bf16.xpose.msra.mxu0 0
        %1651 = vmatprep.subr.bf16.mxu0 0
        %1652 = vmatpush1.bf16.xpose.msra.mxu0 0
        %1653 = vmatprep.subr.bf16.mxu0 0
        %1654 = vmatpush1.bf16.xpose.msra.mxu0 0
        %1655 = vmatprep.subr.bf16.mxu0 0
        %1656 = vmatpush1.bf16.xpose.msra.mxu0 0
        %1657 = vmatprep.subr.bf16.mxu0 0
        %1658 = vmatpush1.bf16.xpose.msra.mxu0 0
        %1659 = vmatprep.subr.bf16.mxu0 0
        %1660 = vmatpush1.bf16.xpose.msra.mxu0 0
        %1661 = vmatprep.subr.bf16.mxu0 0
        %1662 = vmatpush1.bf16.xpose.msra.mxu0 0
        %1663 = vmatprep.subr.bf16.mxu0 0
        %1664 = vmatpush1.bf16.xpose.msra.mxu0 0
        %1665 = vmatprep.subr.bf16.mxu0 0
        %1666 = vmatpush1.bf16.xpose.msra.mxu0 0
        %1667 = vmatprep.subr.bf16.mxu0 0
        %1668 = vmatpush1.bf16.xpose.msra.mxu0 0
        %1669 = vmatprep.mubr.bf16.mxu0 0
        %1670 = vmatmul.mubr.bf16.gmra.mrb[0].mxu0 %v1629
        %v1671 = vpop.f32.mrb[0].mxu0
        %v1672 = vadd.f32 0.0, %v1671
        %v1673 = vpop.f32.mrb[0].mxu0
        %v1674 = vpop.f32.mrb[0].mxu0
        %v1675 = vadd.f32 0.0, %v1674
        %v1676 = vpop.f32.mrb[0].mxu0
        %1677 = vmatprep.mubr.bf16.mxu0 0
        %1678 = vmatmul.mubr.bf16.gmra.mrb[0].mxu0 %v1632
        %v1679 = vpop.f32.mrb[0].mxu0
        %v1680 = vadd.f32 0.0, %v1679
        %v1681 = vpop.f32.mrb[0].mxu0
        %v1682 = vpop.f32.mrb[0].mxu0
        %v1683 = vadd.f32 0.0, %v1682
        %v1684 = vpop.f32.mrb[0].mxu0
        %1685 = vdwg.mxu0
        %v1686 = vsel %vm840, %v1672, -inf
        %1687 = vmax.xlane.f32.xlu0 %v1686
        %v1688 = vpop.xlane.xlu0 %1687
        %v1689 = vsel %vm840, %v1675, -inf
        %1690 = vmax.xlane.f32.xlu0 %v1689
        %v1691 = vpop.xlane.xlu0 %1690
        %v1692 = vsel %vm840, %v1680, -inf
        %1693 = vmax.xlane.f32.xlu0 %v1692
        %v1694 = vpop.xlane.xlu0 %1693
        %v1695 = vsel %vm840, %v1683, -inf
        %1696 = vmax.xlane.f32.xlu0 %v1695
        %v1697 = vpop.xlane.xlu0 %1696
        %v1698 = vsub.f32 %v1672, %v1688
        %v1699 = vsub.f32 %v1675, %v1691
        %v1700 = vsub.f32 %v1680, %v1694
        %v1701 = vsub.f32 %v1683, %v1697
        %v1702 = vmul.f32 %v1698, 1.442695
        %v1703 = vpow.pop %v1702
        %v1704 = vmul.f32 %v1699, 1.442695
        %v1705 = vpow.pop %v1704
        %v1706 = vmul.f32 %v1700, 1.442695
        %v1707 = vpow.pop %v1706
        %v1708 = vmul.f32 %v1701, 1.442695
        %v1709 = vpow.pop %v1708
        %v1710 = vsel %vm840, %v1703, 0.0
        %1711 = vadd.xlane.f32.xlu0 %v1710
        %v1712 = vpop.xlane.xlu0 %1711
        %v1713 = vsel %vm840, %v1705, 0.0
        %1714 = vadd.xlane.f32.xlu0 %v1713
        %v1715 = vpop.xlane.xlu0 %1714
        %v1716 = vsel %vm840, %v1707, 0.0
        %1717 = vadd.xlane.f32.xlu0 %v1716
        %v1718 = vpop.xlane.xlu0 %1717
        %v1719 = vsel %vm840, %v1709, 0.0
        %1720 = vadd.xlane.f32.xlu0 %v1719
        %v1721 = vpop.xlane.xlu0 %1720
        %v1722 = vrcp.pop %v1712
        %v1723 = vrcp.pop %v1715
        %v1724 = vrcp.pop %v1718
        %v1725 = vrcp.pop %v1721
        %v1726 = vmul.f32 %v1703, %v1722
        %v1727 = vmul.f32 %v1705, %v1723
        %v1728 = vmul.f32 %v1707, %v1724
        %v1729 = vmul.f32 %v1709, %v1725
        %v1730 = vpack.c.bf16 %v1727, %v1726
        %v1731 = vpack.c.bf16 %v1729, %v1728
        %1732 = vrot.lane.b32.xlu0 %v835, 80
        %v1733 = vpop.permute.xlu0 %1732
        %v1736 = vsel %vm840, %v1730, 0
        %v1739 = vsel %vm840, %v1731, 0
        %1741 = vmatprep.subr.bf16.mxu0 0
        %1742 = vmatpush1.bf16.msra.mxu0 %v1733
        %1743 = vmatprep.subr.bf16.mxu0 0
        %1744 = vmatpush1.bf16.msra.mxu0 0
        %1745 = vmatprep.subr.bf16.mxu0 0
        %1746 = vmatpush1.bf16.msra.mxu0 0
        %1747 = vmatprep.subr.bf16.mxu0 0
        %1748 = vmatpush1.bf16.msra.mxu0 0
        %1749 = vmatprep.subr.bf16.mxu0 0
        %1750 = vmatpush1.bf16.msra.mxu0 0
        %1751 = vmatprep.subr.bf16.mxu0 0
        %1752 = vmatpush1.bf16.msra.mxu0 0
        %1753 = vmatprep.subr.bf16.mxu0 0
        %1754 = vmatpush1.bf16.msra.mxu0 0
        %1755 = vmatprep.subr.bf16.mxu0 0
        %1756 = vmatpush1.bf16.msra.mxu0 0
        %1757 = vmatprep.subr.bf16.mxu0 0
        %1758 = vmatpush1.bf16.msra.mxu0 0
        %1759 = vmatprep.subr.bf16.mxu0 0
        %1760 = vmatpush1.bf16.msra.mxu0 0
        %1761 = vmatprep.subr.bf16.mxu0 0
        %1762 = vmatpush1.bf16.msra.mxu0 0
        %1763 = vmatprep.subr.bf16.mxu0 0
        %1764 = vmatpush1.bf16.msra.mxu0 0
        %1765 = vmatprep.subr.bf16.mxu0 0
        %1766 = vmatpush1.bf16.msra.mxu0 0
        %1767 = vmatprep.subr.bf16.mxu0 0
        %1768 = vmatpush1.bf16.msra.mxu0 0
        %1769 = vmatprep.subr.bf16.mxu0 0
        %1770 = vmatpush1.bf16.msra.mxu0 0
        %1771 = vmatprep.subr.bf16.mxu0 0
        %1772 = vmatpush1.bf16.msra.mxu0 0
        %1773 = vmatprep.mubr.bf16.mxu0 0
        %1774 = vmatmul.mubr.bf16.gmra.mrb[0].mxu0 %v1736
        %v1775 = vpop.f32.mrb[0].mxu0
        %v1776 = vadd.f32 0.0, %v1775
        %v1777 = vpop.f32.mrb[0].mxu0
        %v1778 = vpop.f32.mrb[0].mxu0
        %v1779 = vadd.f32 0.0, %v1778
        %v1780 = vpop.f32.mrb[0].mxu0
        %1781 = vmatprep.mubr.bf16.mxu0 0
        %1782 = vmatmul.mubr.bf16.gmra.mrb[0].mxu0 %v1739
        %v1783 = vpop.f32.mrb[0].mxu0
        %v1784 = vadd.f32 0.0, %v1783
        %v1785 = vpop.f32.mrb[0].mxu0
        %v1786 = vpop.f32.mrb[0].mxu0
        %v1787 = vadd.f32 0.0, %v1786
        %v1788 = vpop.f32.mrb[0].mxu0
        %1789 = vdwg.mxu0
        %v1790 = vpack.c.bf16 %v1779, %v1776
        %v1791 = vpack.c.bf16 %v1787, %v1784
        %v1793 = vsel %vm840, %v1790, 0
        %1795 = vmatprep.subr.bf16.mxu0 0
        %1796 = vmatpush1.bf16.msra.mxu0 %v1006
        %1797 = vmatprep.subr.bf16.mxu0 0
        %1798 = vmatpush1.bf16.msra.mxu0 0
        %1799 = vmatprep.subr.bf16.mxu0 0
        %1800 = vmatpush1.bf16.msra.mxu0 0
        %1801 = vmatprep.subr.bf16.mxu0 0
        %1802 = vmatpush1.bf16.msra.mxu0 0
        %1803 = vmatprep.subr.bf16.mxu0 0
        %1804 = vmatpush1.bf16.msra.mxu0 0
        %1805 = vmatprep.subr.bf16.mxu0 0
        %1806 = vmatpush1.bf16.msra.mxu0 0
        %1807 = vmatprep.subr.bf16.mxu0 0
        %1808 = vmatpush1.bf16.msra.mxu0 0
        %1809 = vmatprep.subr.bf16.mxu0 0
        %1810 = vmatpush1.bf16.msra.mxu0 0
        %1811 = vmatprep.subr.bf16.mxu0 0
        %1812 = vmatpush1.bf16.msra.mxu0 0
        %1813 = vmatprep.subr.bf16.mxu0 0
        %1814 = vmatpush1.bf16.msra.mxu0 0
        %1815 = vmatprep.subr.bf16.mxu0 0
        %1816 = vmatpush1.bf16.msra.mxu0 0
        %1817 = vmatprep.subr.bf16.mxu0 0
        %1818 = vmatpush1.bf16.msra.mxu0 0
        %1819 = vmatprep.subr.bf16.mxu0 0
        %1820 = vmatpush1.bf16.msra.mxu0 0
        %1821 = vmatprep.subr.bf16.mxu0 0
        %1822 = vmatpush1.bf16.msra.mxu0 0
        %1823 = vmatprep.subr.bf16.mxu0 0
        %1824 = vmatpush1.bf16.msra.mxu0 0
        %1825 = vmatprep.subr.bf16.mxu0 0
        %1826 = vmatpush1.bf16.msra.mxu0 0
        %1827 = vmatprep.mubr.bf16.mxu0 0
        %1828 = vmatmul.mubr.bf16.gmra.mrb[0].mxu0 %v1793
        %v1829 = vpop.f32.mrb[0].mxu0
        %v1830 = vadd.f32 0.0, %v1829
        %v1831 = vpop.f32.mrb[0].mxu0
        %v1832 = vpop.f32.mrb[0].mxu0
        %v1833 = vadd.f32 0.0, %v1832
        %v1834 = vpop.f32.mrb[0].mxu0
        %1835 = vdwg.mxu0
        %v1837 = vsel %vm840, %v1791, 0
        %1839 = vmatprep.subr.bf16.mxu0 0
        %1840 = vmatpush1.bf16.msra.mxu0 %v1056
        %1841 = vmatprep.subr.bf16.mxu0 0
        %1842 = vmatpush1.bf16.msra.mxu0 0
        %1843 = vmatprep.subr.bf16.mxu0 0
        %1844 = vmatpush1.bf16.msra.mxu0 0
        %1845 = vmatprep.subr.bf16.mxu0 0
        %1846 = vmatpush1.bf16.msra.mxu0 0
        %1847 = vmatprep.subr.bf16.mxu0 0
        %1848 = vmatpush1.bf16.msra.mxu0 0
        %1849 = vmatprep.subr.bf16.mxu0 0
        %1850 = vmatpush1.bf16.msra.mxu0 0
        %1851 = vmatprep.subr.bf16.mxu0 0
        %1852 = vmatpush1.bf16.msra.mxu0 0
        %1853 = vmatprep.subr.bf16.mxu0 0
        %1854 = vmatpush1.bf16.msra.mxu0 0
        %1855 = vmatprep.subr.bf16.mxu0 0
        %1856 = vmatpush1.bf16.msra.mxu0 0
        %1857 = vmatprep.subr.bf16.mxu0 0
        %1858 = vmatpush1.bf16.msra.mxu0 0
        %1859 = vmatprep.subr.bf16.mxu0 0
        %1860 = vmatpush1.bf16.msra.mxu0 0
        %1861 = vmatprep.subr.bf16.mxu0 0
        %1862 = vmatpush1.bf16.msra.mxu0 0
        %1863 = vmatprep.subr.bf16.mxu0 0
        %1864 = vmatpush1.bf16.msra.mxu0 0
        %1865 = vmatprep.subr.bf16.mxu0 0
        %1866 = vmatpush1.bf16.msra.mxu0 0
        %1867 = vmatprep.subr.bf16.mxu0 0
        %1868 = vmatpush1.bf16.msra.mxu0 0
        %1869 = vmatprep.subr.bf16.mxu0 0
        %1870 = vmatpush1.bf16.msra.mxu0 0
        %1871 = vmatprep.mubr.bf16.mxu0 0
        %1872 = vmatmul.mubr.bf16.gmra.mrb[0].mxu0 %v1837
        %v1873 = vpop.f32.mrb[0].mxu0
        %v1874 = vadd.f32 0.0, %v1873
        %v1875 = vpop.f32.mrb[0].mxu0
        %v1876 = vpop.f32.mrb[0].mxu0
        %v1877 = vadd.f32 0.0, %v1876
        %v1878 = vpop.f32.mrb[0].mxu0
        %1879 = vdwg.mxu0
        %1882 = vrot.lane.b32.xlu0 %v1314, 16
        %v1883 = vpop.permute.xlu0 %1882
        %1884 = vrot.lane.b32.xlu0 %v1317, 16
        %v1885 = vpop.permute.xlu0 %1884
        %1890 = vrot.lane.b32.xlu0 %v1572, 32
        %v1891 = vpop.permute.xlu0 %1890
        %1892 = vrot.lane.b32.xlu0 %v1575, 32
        %v1893 = vpop.permute.xlu0 %1892
        %1898 = vrot.lane.b32.xlu0 %v1830, 48
        %v1899 = vpop.permute.xlu0 %1898
        %1900 = vrot.lane.b32.xlu0 %v1833, 48
        %v1901 = vpop.permute.xlu0 %1900
        %v1904 = vsel %vm840, %v1046, %v1883
        %v1905 = vsel %vm840, %v1049, %v1885
        %vm1906 = vcmask 261120
        %v1907 = vsel %vm1906, %v1904, %v1891
        %v1908 = vsel %vm1906, %v1905, %v1893
        %vm1909 = vcmask 392192
        %v1910 = vsel %vm1909, %v1907, %v1899
        %v1911 = vsel %vm1909, %v1908, %v1901
        %v1912 = vld [vmem:[%s8] sm:$0x1]
        %v1914 = vlaneseq
        %v1915 = vshrl.u32 %v1914, 7
        %v1916 = vsub.s32 0, %v1915
        %v1917 = vrot.slane %v1912, %v1916
        %v1919 = vadd.f32 %v1910, %v1917
        %v1920 = vadd.f32 %v1911, %v1917
        %v1921 = vadd.f32 %v1919, %v629
        %v1922 = vadd.f32 %v1920, %v632
        %1923 = vst.msk [vmem:[%s425] sm:$0xff] %vm452, %v1921
        %1924 = vst.msk [vmem:[%s425 + $0x8] sm:$0xff] %vm452, %v1922
        %1927 = vrot.lane.b32.xlu0 %v1358, 16
        %v1928 = vpop.permute.xlu0 %1927
        %1929 = vrot.lane.b32.xlu0 %v1361, 16
        %v1930 = vpop.permute.xlu0 %1929
        %1935 = vrot.lane.b32.xlu0 %v1616, 32
        %v1936 = vpop.permute.xlu0 %1935
        %1937 = vrot.lane.b32.xlu0 %v1619, 32
        %v1938 = vpop.permute.xlu0 %1937
        %1943 = vrot.lane.b32.xlu0 %v1874, 48
        %v1944 = vpop.permute.xlu0 %1943
        %1945 = vrot.lane.b32.xlu0 %v1877, 48
        %v1946 = vpop.permute.xlu0 %1945
        %v1949 = vsel %vm840, %v1096, %v1928
        %v1950 = vsel %vm840, %v1099, %v1930
        %v1951 = vsel %vm1906, %v1949, %v1936
        %v1952 = vsel %vm1906, %v1950, %v1938
        %v1953 = vsel %vm1909, %v1951, %v1944
        %v1954 = vsel %vm1909, %v1952, %v1946
        %v1955 = vld [vmem:[%s10] sm:$0x1]
        %v1957 = vlaneseq
        %v1958 = vshrl.u32 %v1957, 7
        %v1959 = vsub.s32 0, %v1958
        %v1960 = vrot.slane %v1955, %v1959
        %v1962 = vadd.f32 %v1953, %v1960
        %v1963 = vadd.f32 %v1954, %v1960
        %v1964 = vadd.f32 %v1962, %v673
        %v1965 = vadd.f32 %v1963, %v676
        %1966 = vst.msk [vmem:[%s432] sm:$0xff] %vm452, %v1964
        %1967 = vst.msk [vmem:[%s432 + $0x8] sm:$0xff] %vm452, %v1965
        %s1968 = sand.u32 %s279, 1
        %s1969 = scalar_lea.sflag [#allocation3], %s1968
        %s1970 = sand.u32 %s279, 1
        %s1971 = smul.addr %s1970, 16
        %s1972 = scalar_lea.vmem [#allocation2], %s1971
        %s1973 = sand.u32 %s305, 1
        %s1974 = scalar_lea.sflag [#allocation5], %s1973
        %s1975 = sand.u32 %s305, 1
        %s1976 = smul.addr %s1975, 16
        %s1977 = scalar_lea.vmem [#allocation4], %s1976
        // Predicated region
        $region65: #{fun1_forward.1} parent=63 // pred_check
          %p1978 = pneg %p289
        $region66: #{fun1_forward.1} parent=63 // pred_check_branch
          %1980 = sbr.rel (%p1978) target = $region68
        $region67: #{fun1_forward.1} parent=63 // pred_region
          %s1982 = ssub.s32 256, 256
          %1983 = vsyncadd %s1969, %s1982
          %s1984 = smul.addr %s30, 2
          %s1985 = smul.addr %s1984, 128
          %s1986 = scalar_lea.hbm %s11, %s1985
          %s1987 = sshll.u32 %s1972, 4
          %s1988 = int_to_ptr.vmem [resolvable:$true] %s1987
          %1993 = dma.vmem_to_hbm [thread:$0]  %s1988, 256, %s1986, %s1969, 128, 128, 8
        $region68: #{fun1_forward.1} parent=63 // pred_fallthru
          _
        // Predicated region
        $region69: #{fun1_forward.1} parent=63 // pred_check
          %p1994 = pneg %p315
        $region70: #{fun1_forward.1} parent=63 // pred_check_branch
          %1996 = sbr.rel (%p1994) target = $region72
        $region71: #{fun1_forward.1} parent=63 // pred_region
          %s1998 = ssub.s32 256, 256
          %1999 = vsyncadd %s1974, %s1998
          %s2000 = smul.addr %s30, 2
          %s2001 = smul.addr %s2000, 128
          %s2002 = scalar_lea.hbm %s12, %s2001
          %s2003 = sshll.u32 %s1977, 4
          %s2004 = int_to_ptr.vmem [resolvable:$true] %s2003
          %2009 = dma.vmem_to_hbm [thread:$0]  %s2004, 256, %s2002, %s1974, 128, 128, 8
        $region72: #{fun1_forward.1} parent=63 // pred_fallthru
          _
      $region64: #{fun1_forward.1} parent=5 // pred_fallthru
        _
      %p2010 = scmp.le.s32.totalorder 2, %s25
      // Predicated region
      $region73: #{fun1_forward.1} parent=5 // pred_check
        %p2011 = pneg %p2010
      $region74: #{fun1_forward.1} parent=5 // pred_check_branch
        %2013 = sbr.rel (%p2011) target = $region76
      $region75: #{fun1_forward.1} parent=5 // pred_region
        %s2014 = ssub.s32 %s25, 2
        // Predicated region
        $region77: #{fun1_forward.1} parent=75 // pred_check
          %p2015 = pneg %p295
        $region78: #{fun1_forward.1} parent=75 // pred_check_branch
          %2017 = sbr.rel (%p2015) target = $region80
        $region79: #{fun1_forward.1} parent=75 // pred_region
          %s2018 = sand.u32 %s280, 1
          %s2019 = scalar_lea.sflag [#allocation3], %s2018
          %s2020 = sand.u32 %s280, 1
          %s2021 = smul.addr %s2020, 16
          %s2022 = scalar_lea.vmem [#allocation2], %s2021
          %2023 = dma.done %s2019, 256
        $region80: #{fun1_forward.1} parent=75 // pred_fallthru
          _
        // Predicated region
        $region81: #{fun1_forward.1} parent=75 // pred_check
          %p2024 = pneg %p321
        $region82: #{fun1_forward.1} parent=75 // pred_check_branch
          %2026 = sbr.rel (%p2024) target = $region84
        $region83: #{fun1_forward.1} parent=75 // pred_region
          %s2027 = sand.u32 %s306, 1
          %s2028 = scalar_lea.sflag [#allocation5], %s2027
          %s2029 = sand.u32 %s306, 1
          %s2030 = smul.addr %s2029, 16
          %s2031 = scalar_lea.vmem [#allocation4], %s2030
          %2032 = dma.done %s2028, 256
        $region84: #{fun1_forward.1} parent=75 // pred_fallthru
          _
      $region76: #{fun1_forward.1} parent=5 // pred_fallthru
        _
    $region6: #{fun1_forward.1} parent=1 // loop_footer
      %s29 = sadd.s32 1, %s25
    $region7: #{fun1_forward.1} parent=1 // loop_footer_branch
      %24 = sbr.rel target = $region3
    $region8: #{fun1_forward.1} parent=1 // loop_exit
      _
    %2033 = vsyncpa [#allocation3], 1
    %s2034 = scalar_lea.sflag [#allocation3], 1
    %2035 = vsyncpa %s2034, 1
    %2036 = vsyncpa [#allocation5], 1
    %s2037 = scalar_lea.sflag [#allocation5], 1
    %2038 = vsyncpa %s2037, 1

</llo_original>
